<compile_context>
chip_gen: v7x
topology: tpu7x:2x2x1
jax: 0.10.0
libtpu: 0.0.40
codegen_flags: <defaults>
</compile_context>

<pallas_src>
import jax
import jax.numpy as jnp
from jax.experimental import pallas as pl
from jax.experimental.pallas import tpu as pltpu

LANE = 128


def _round_up(x, m):
    return (x + m - 1) // m * m


# ---------------------------------------------------------------------------
# Kernel: whole sequence in one invocation.
# ---------------------------------------------------------------------------
def gru_seq_kernel(x_ref,       # (T, Hp)  bf16   gathered embedding rows
                   h0_ref,      # (1, Hp)  f32    initial hidden
                   wih_ref,     # (Hp, 3Hp) bf16  W_ih^T (gate-block padded)
                   whh_ref,     # (Hp, 3Hp) bf16  W_hh^T
                   bi_ref,      # (1, 3Hp) f32    folded bias: [b_ir+b_hr | b_iz+b_hz | b_in]
                   bhn_ref,     # (1, Hp)  f32    b_hn (kept separate: sits under r*)
                   wout_ref,    # (Hp, Op) bf16   W_out^T
                   bout_ref,    # (1, Op)  f32
                   out_ref,     # (T, Op)  f32    per-step logits
                   hout_ref,    # (1, Hp)  f32    final hidden
                   gi_buf,      # VMEM (T, 3Hp) f32  hoisted input projection
                   h_buf):      # VMEM (T, Hp)  f32  hidden states for batched out-proj
    T = x_ref.shape[0]
    Hp = h0_ref.shape[-1]

    # --- Hoisted input projection: one (T,Hp)@(Hp,3Hp) MXU matmul, f32 accumulate.
    gi_buf[...] = (jnp.dot(x_ref[...], wih_ref[...],
                           preferred_element_type=jnp.float32) + bi_ref[...])

    # --- Serial recurrence: only h @ W_hh + gate math per step.
    def step(t, h):
        gi = gi_buf[pl.ds(t, 1), :]                          # (1, 3Hp) f32
        gh = jnp.dot(h.astype(jnp.bfloat16), whh_ref[...],
                     preferred_element_type=jnp.float32)     # (1, 3Hp) f32
        # Gate slices fall on 128-lane boundaries (each gate block padded to Hp).
        r = jax.nn.sigmoid(gi[:, 0:Hp] + gh[:, 0:Hp])
        z = jax.nn.sigmoid(gi[:, Hp:2 * Hp] + gh[:, Hp:2 * Hp])
        n = jnp.tanh(gi[:, 2 * Hp:3 * Hp] + r * (gh[:, 2 * Hp:3 * Hp] + bhn_ref[...]))
        h_new = (1.0 - z) * n + z * h
        h_buf[pl.ds(t, 1), :] = h_new                        # cheap VMEM scratch store
        return h_new

    h_final = jax.lax.fori_loop(0, T, step, h0_ref[...], unroll=True)

    # --- Batched output projection + one lane/sublane-dense (T, Op) store.
    out_ref[...] = (jnp.dot(h_buf[...].astype(jnp.bfloat16), wout_ref[...],
                            preferred_element_type=jnp.float32)
                    + bout_ref[...]).astype(out_ref.dtype)

    # Final hidden written once (not per step).
    hout_ref[...] = h_final.astype(hout_ref.dtype)


# ---------------------------------------------------------------------------
# Wrappers
# ---------------------------------------------------------------------------
def rnn_forward_seq(tokens, hidden, p):
    """tokens: int32 (T,), hidden: (1,1,H). Returns (logits (T,O), hidden (1,1,H))."""
    H, O, Hp, Op = p["H"], p["O"], p["Hp"], p["Op"]
    T = int(tokens.shape[0])

    # Gather embedding rows once in the wrapper (tiny V/T); kernel gets (T, Hp) bf16.
    x = jnp.take(p["emb"], tokens.astype(jnp.int32), axis=0)
    h0 = jnp.zeros((1, Hp), jnp.float32).at[:, :H].set(hidden.reshape(1, H))

    vmem = pl.BlockSpec(memory_space=pltpu.MemorySpace.VMEM)

    logits_p, h_p = pl.pallas_call(
        gru_seq_kernel,
        out_shape=(jax.ShapeDtypeStruct((T, Op), jnp.float32),
                   jax.ShapeDtypeStruct((1, Hp), jnp.float32)),
        in_specs=[vmem] * 8,
        out_specs=(vmem, vmem),
        scratch_shapes=[
            pltpu.VMEM((T, 3 * Hp), jnp.float32),   # hoisted input projection
            pltpu.VMEM((T, Hp), jnp.float32),       # per-step hidden states
        ],
        compiler_params=pltpu.CompilerParams(vmem_limit_bytes=32 * 1024 * 1024),
    )(x, h0, p["w_ih_t"], p["w_hh_t"], p["b_i"], p["b_hn"], p["w_out_t"], p["b_out"])

    return logits_p[:, :O], h_p[:, :H].reshape(1, 1, H)


def rnn_forward(token, hidden, p):
    """Exact single-step semantics of the PyTorch module's forward()."""
    logits, h_new = rnn_forward_seq(token.reshape(1), hidden, p)
    return logits, h_new


# ---------------------------------------------------------------------------
# Parameters (PyTorch layout -> packed kernel layout)
# ---------------------------------------------------------------------------
def init_params(key, input_size, hidden_size, output_size):
    ks = jax.random.split(key, 7)
    s = 0.1
    emb = jax.random.normal(ks[0], (input_size, hidden_size), jnp.float32)
    w_ih = s * jax.random.normal(ks[1], (3 * hidden_size, hidden_size), jnp.float32)
    w_hh = s * jax.random.normal(ks[2], (3 * hidden_size, hidden_size), jnp.float32)
    b_ih = s * jax.random.normal(ks[3], (3 * hidden_size,), jnp.float32)
    b_hh = s * jax.random.normal(ks[4], (3 * hidden_size,), jnp.float32)
    w_out = s * jax.random.normal(ks[5], (output_size, hidden_size), jnp.float32)
    b_out = s * jax.random.normal(ks[6], (output_size,), jnp.float32)
    return emb, w_ih, w_hh, b_ih, b_hh, w_out, b_out


def pack_params(raw, hidden_size, output_size):
    """Pad each gate block to Hp lanes, transpose to (in,out), fold biases, cast to bf16."""
    emb, w_ih, w_hh, b_ih, b_hh, w_out, b_out = raw
    H, O = hidden_size, output_size
    Hp, Op = _round_up(H, LANE), _round_up(O, LANE)
    V = emb.shape[0]

    def pad_gate_w(w):                      # (3H, H) -> (Hp, 3Hp), transposed, gate-padded
        out = jnp.zeros((Hp, 3 * Hp), jnp.float32)
        for g in range(3):
            out = out.at[:H, g * Hp:g * Hp + H].set(w[g * H:(g + 1) * H, :].T)
        return out

    # Folded bias: r,z blocks get b_ih+b_hh; n block gets b_in only (b_hn stays separate,
    # because PyTorch computes n = tanh(W_in x + b_in + r*(W_hn h + b_hn))).
    b_i = jnp.zeros((1, 3 * Hp), jnp.float32)
    b_i = b_i.at[0, 0:H].set(b_ih[0:H] + b_hh[0:H])                      # r
    b_i = b_i.at[0, Hp:Hp + H].set(b_ih[H:2 * H] + b_hh[H:2 * H])        # z
    b_i = b_i.at[0, 2 * Hp:2 * Hp + H].set(b_ih[2 * H:3 * H])            # n (input part)
    b_hn = jnp.zeros((1, Hp), jnp.float32).at[0, :H].set(b_hh[2 * H:3 * H])

    return dict(
        emb=jnp.zeros((V, Hp), jnp.float32).at[:, :H].set(emb).astype(jnp.bfloat16),
        w_ih_t=pad_gate_w(w_ih).astype(jnp.bfloat16),
        w_hh_t=pad_gate_w(w_hh).astype(jnp.bfloat16),
        b_i=b_i,
        b_hn=b_hn,
        w_out_t=jnp.zeros((Hp, Op), jnp.float32).at[:H, :O].set(w_out.T).astype(jnp.bfloat16),
        b_out=jnp.zeros((1, Op), jnp.float32).at[0, :O].set(b_out),
        H=H, O=O, Hp=Hp, Op=Op)


# ---------------------------------------------------------------------------
# Pure-JAX reference (same bf16-stored weights / bf16 matmul inputs, f32 gate math)
# ---------------------------------------------------------------------------
def rnn_forward_seq_ref(tokens, hidden, p):
    H, O, Hp = p["H"], p["O"], p["Hp"]
    hi = jax.lax.Precision.HIGHEST
    emb = p["emb"].astype(jnp.float32)
    w_ih = p["w_ih_t"].astype(jnp.float32)
    w_hh = p["w_hh_t"].astype(jnp.float32)
    w_out = p["w_out_t"].astype(jnp.float32)

    x_all = emb[tokens]                                              # (T, Hp)
    gi_all = jnp.dot(x_all, w_ih, precision=hi) + p["b_i"]           # (T, 3Hp)
    h = jnp.zeros((1, Hp), jnp.float32).at[:, :H].set(hidden.reshape(1, H))
    hs = []
    for t in range(int(tokens.shape[0])):
        gi = gi_all[t:t + 1]
        hb = h.astype(jnp.bfloat16).astype(jnp.float32)
        gh = jnp.dot(hb, w_hh, precision=hi)
        r = jax.nn.sigmoid(gi[:, :Hp] + gh[:, :Hp])
        z = jax.nn.sigmoid(gi[:, Hp:2 * Hp] + gh[:, Hp:2 * Hp])
        n = jnp.tanh(gi[:, 2 * Hp:] + r * (gh[:, 2 * Hp:] + p["b_hn"]))
        h = (1.0 - z) * n + z * h
        hs.append(h[0])
    h_seq = jnp.stack(hs).astype(jnp.bfloat16).astype(jnp.float32)
    logits = jnp.dot(h_seq, w_out, precision=hi) + p["b_out"]
    return logits[:, :O], h[:, :H].reshape(1, 1, H)


# ---------------------------------------------------------------------------
if __name__ == "__main__":
    input_size, hidden_size, output_size = 16, 32, 16
    T = 8

    key = jax.random.PRNGKey(0)
    pkey, tkey, hkey = jax.random.split(key, 3)
    raw = init_params(pkey, input_size, hidden_size, output_size)
    packed = pack_params(raw, hidden_size, output_size)

    tokens = jax.random.randint(tkey, (T,), 0, input_size, dtype=jnp.int32)
    hidden = jax.random.normal(hkey, (1, 1, hidden_size), jnp.float32)

    # Fused-sequence kernel (time loop inside a single kernel invocation).
    logits, h_fin = rnn_forward_seq(tokens, hidden, packed)
    logits, h_fin = jax.block_until_ready((logits, h_fin))
    logits_ref, h_ref = rnn_forward_seq_ref(tokens, hidden, packed)
    assert logits.shape == (T, output_size)
    assert h_fin.shape == (1, 1, hidden_size)
    assert jnp.allclose(logits, logits_ref, atol=1e-3, rtol=1e-3)
    assert jnp.allclose(h_fin, h_ref, atol=1e-3, rtol=1e-3)

    # Single-step call matching the PyTorch module's forward() exactly.
    out1, h1 = rnn_forward(tokens[:1], hidden, packed)
    out1, h1 = jax.block_until_ready((out1, h1))
    out1_ref, h1_ref = rnn_forward_seq_ref(tokens[:1], hidden, packed)
    assert out1.shape == (1, output_size) and h1.shape == (1, 1, hidden_size)
    assert jnp.allclose(out1, out1_ref, atol=1e-3, rtol=1e-3)
    assert jnp.allclose(h1, h1_ref, atol=1e-3, rtol=1e-3)

    print("KERNEL_OK")
</pallas_src>

<mosaic_0001>
module attributes {stable_mosaic.version = 11 : i64} {
  func.func @gru_seq_kernel(%arg0: memref<8x128xbf16, #tpu.memory_space<vmem>>, %arg1: memref<1x128xf32, #tpu.memory_space<vmem>>, %arg2: memref<128x384xbf16, #tpu.memory_space<vmem>>, %arg3: memref<128x384xbf16, #tpu.memory_space<vmem>>, %arg4: memref<1x384xf32, #tpu.memory_space<vmem>>, %arg5: memref<1x128xf32, #tpu.memory_space<vmem>>, %arg6: memref<128x128xbf16, #tpu.memory_space<vmem>>, %arg7: memref<1x128xf32, #tpu.memory_space<vmem>>, %arg8: memref<8x128xf32, #tpu.memory_space<vmem>>, %arg9: memref<1x128xf32, #tpu.memory_space<vmem>>, %arg10: memref<8x384xf32, #tpu.memory_space<vmem>>, %arg11: memref<8x128xf32, #tpu.memory_space<vmem>>) attributes {dimension_semantics = [], scalar_prefetch = 0 : i64, scratch_operands = 2 : i64, tpu.core_type = #tpu.core_type<tc>} {
    %c0 = arith.constant 0 : index
    %c0_0 = arith.constant 0 : index
    %0 = vector.load %arg0[%c0, %c0_0] : memref<8x128xbf16, #tpu.memory_space<vmem>>, vector<8x128xbf16>
    %c0_1 = arith.constant 0 : index
    %c0_2 = arith.constant 0 : index
    %1 = vector.load %arg2[%c0_1, %c0_2] : memref<128x384xbf16, #tpu.memory_space<vmem>>, vector<128x384xbf16>
    %cst = arith.constant dense<0.000000e+00> : vector<8x384xf32>
    %2 = tpu.matmul %0, %1, %cst {dimension_numbers = #tpu.dot_dimension_numbers<[1], [0], [0], [1], [0, 0, 1, 1], [], []>} : vector<8x128xbf16>, vector<128x384xbf16>, vector<8x384xf32> -> vector<8x384xf32>
    %c0_3 = arith.constant 0 : index
    %c0_4 = arith.constant 0 : index
    %3 = vector.load %arg4[%c0_3, %c0_4] : memref<1x384xf32, #tpu.memory_space<vmem>>, vector<1x384xf32>
    %4 = vector.broadcast %3 : vector<1x384xf32> to vector<8x384xf32>
    %5 = arith.addf %2, %4 : vector<8x384xf32>
    %c0_5 = arith.constant 0 : index
    %c0_6 = arith.constant 0 : index
    %6 = vector.load %arg10[%c0_5, %c0_6] : memref<8x384xf32, #tpu.memory_space<vmem>>, vector<8x384xf32>
    tpu.vector_store %arg10[%c0_5, %c0_6], %5 {strides = array<i32>} : memref<8x384xf32, #tpu.memory_space<vmem>>, vector<8x384xf32>,
    %c0_7 = arith.constant 0 : index
    %c0_8 = arith.constant 0 : index
    %7 = vector.load %arg1[%c0_7, %c0_8] : memref<1x128xf32, #tpu.memory_space<vmem>>, vector<1x128xf32>
    %c0_i32 = arith.constant 0 : i32
    %8 = arith.index_cast %c0_i32 : i32 to index
    %c0_9 = arith.constant 0 : index
    %9 = vector.load %arg10[%8, %c0_9] : memref<8x384xf32, #tpu.memory_space<vmem>>, vector<1x384xf32>
    %10 = arith.truncf %7 : vector<1x128xf32> to vector<1x128xbf16>
    %c0_10 = arith.constant 0 : index
    %c0_11 = arith.constant 0 : index
    %11 = vector.load %arg3[%c0_10, %c0_11] : memref<128x384xbf16, #tpu.memory_space<vmem>>, vector<128x384xbf16>
    %cst_12 = arith.constant dense<0.000000e+00> : vector<1x384xf32>
    %12 = tpu.matmul %10, %11, %cst_12 {dimension_numbers = #tpu.dot_dimension_numbers<[1], [0], [0], [1], [0, 0, 1, 1], [], []>} : vector<1x128xbf16>, vector<128x384xbf16>, vector<1x384xf32> -> vector<1x384xf32>
    %13 = vector.extract_strided_slice %9 {offsets = [0, 0], sizes = [1, 128], strides = [1, 1]} : vector<1x384xf32> to vector<1x128xf32>
    %14 = vector.extract_strided_slice %12 {offsets = [0, 0], sizes = [1, 128], strides = [1, 1]} : vector<1x384xf32> to vector<1x128xf32>
    %15 = arith.addf %13, %14 : vector<1x128xf32>
    %16 = arith.negf %15 : vector<1x128xf32>
    %17 = math.exp %16 : vector<1x128xf32>
    %cst_13 = arith.constant 1.000000e+00 : f32
    %18 = vector.broadcast %cst_13 : f32 to vector<1x128xf32>
    %19 = arith.addf %18, %17 : vector<1x128xf32>
    %20 = arith.divf %18, %19 : vector<1x128xf32>
    %21 = vector.extract_strided_slice %9 {offsets = [0, 128], sizes = [1, 128], strides = [1, 1]} : vector<1x384xf32> to vector<1x128xf32>
    %22 = vector.extract_strided_slice %12 {offsets = [0, 128], sizes = [1, 128], strides = [1, 1]} : vector<1x384xf32> to vector<1x128xf32>
    %23 = arith.addf %21, %22 : vector<1x128xf32>
    %24 = arith.negf %23 : vector<1x128xf32>
    %25 = math.exp %24 : vector<1x128xf32>
    %cst_14 = arith.constant 1.000000e+00 : f32
    %26 = vector.broadcast %cst_14 : f32 to vector<1x128xf32>
    %27 = arith.addf %26, %25 : vector<1x128xf32>
    %28 = arith.divf %26, %27 : vector<1x128xf32>
    %29 = vector.extract_strided_slice %9 {offsets = [0, 256], sizes = [1, 128], strides = [1, 1]} : vector<1x384xf32> to vector<1x128xf32>
    %30 = vector.extract_strided_slice %12 {offsets = [0, 256], sizes = [1, 128], strides = [1, 1]} : vector<1x384xf32> to vector<1x128xf32>
    %c0_15 = arith.constant 0 : index
    %c0_16 = arith.constant 0 : index
    %31 = vector.load %arg5[%c0_15, %c0_16] : memref<1x128xf32, #tpu.memory_space<vmem>>, vector<1x128xf32>
    %32 = arith.addf %30, %31 : vector<1x128xf32>
    %33 = arith.mulf %20, %32 : vector<1x128xf32>
    %34 = arith.addf %29, %33 : vector<1x128xf32>
    %35 = math.tanh %34 : vector<1x128xf32>
    %cst_17 = arith.constant 1.000000e+00 : f32
    %36 = vector.broadcast %cst_17 : f32 to vector<1x128xf32>
    %37 = arith.subf %36, %28 : vector<1x128xf32>
    %38 = arith.mulf %37, %35 : vector<1x128xf32>
    %39 = arith.mulf %28, %7 : vector<1x128xf32>
    %40 = arith.addf %38, %39 : vector<1x128xf32>
    %41 = arith.index_cast %c0_i32 : i32 to index
    %c0_18 = arith.constant 0 : index
    %42 = vector.load %arg11[%41, %c0_18] : memref<8x128xf32, #tpu.memory_space<vmem>>, vector<1x128xf32>
    tpu.vector_store %arg11[%41, %c0_18], %40 {strides = array<i32>} : memref<8x128xf32, #tpu.memory_space<vmem>>, vector<1x128xf32>,
    %c1_i32 = arith.constant 1 : i32
    %43 = arith.index_cast %c1_i32 : i32 to index
    %c0_19 = arith.constant 0 : index
    %44 = vector.load %arg10[%43, %c0_19] : memref<8x384xf32, #tpu.memory_space<vmem>>, vector<1x384xf32>
    %45 = arith.truncf %40 : vector<1x128xf32> to vector<1x128xbf16>
    %c0_20 = arith.constant 0 : index
    %c0_21 = arith.constant 0 : index
    %46 = vector.load %arg3[%c0_20, %c0_21] : memref<128x384xbf16, #tpu.memory_space<vmem>>, vector<128x384xbf16>
    %cst_22 = arith.constant dense<0.000000e+00> : vector<1x384xf32>
    %47 = tpu.matmul %45, %46, %cst_22 {dimension_numbers = #tpu.dot_dimension_numbers<[1], [0], [0], [1], [0, 0, 1, 1], [], []>} : vector<1x128xbf16>, vector<128x384xbf16>, vector<1x384xf32> -> vector<1x384xf32>
    %48 = vector.extract_strided_slice %44 {offsets = [0, 0], sizes = [1, 128], strides = [1, 1]} : vector<1x384xf32> to vector<1x128xf32>
    %49 = vector.extract_strided_slice %47 {offsets = [0, 0], sizes = [1, 128], strides = [1, 1]} : vector<1x384xf32> to vector<1x128xf32>
    %50 = arith.addf %48, %49 : vector<1x128xf32>
    %51 = arith.negf %50 : vector<1x128xf32>
    %52 = math.exp %51 : vector<1x128xf32>
    %cst_23 = arith.constant 1.000000e+00 : f32
    %53 = vector.broadcast %cst_23 : f32 to vector<1x128xf32>
    %54 = arith.addf %53, %52 : vector<1x128xf32>
    %55 = arith.divf %53, %54 : vector<1x128xf32>
    %56 = vector.extract_strided_slice %44 {offsets = [0, 128], sizes = [1, 128], strides = [1, 1]} : vector<1x384xf32> to vector<1x128xf32>
    %57 = vector.extract_strided_slice %47 {offsets = [0, 128], sizes = [1, 128], strides = [1, 1]} : vector<1x384xf32> to vector<1x128xf32>
    %58 = arith.addf %56, %57 : vector<1x128xf32>
    %59 = arith.negf %58 : vector<1x128xf32>
    %60 = math.exp %59 : vector<1x128xf32>
    %cst_24 = arith.constant 1.000000e+00 : f32
    %61 = vector.broadcast %cst_24 : f32 to vector<1x128xf32>
    %62 = arith.addf %61, %60 : vector<1x128xf32>
    %63 = arith.divf %61, %62 : vector<1x128xf32>
    %64 = vector.extract_strided_slice %44 {offsets = [0, 256], sizes = [1, 128], strides = [1, 1]} : vector<1x384xf32> to vector<1x128xf32>
    %65 = vector.extract_strided_slice %47 {offsets = [0, 256], sizes = [1, 128], strides = [1, 1]} : vector<1x384xf32> to vector<1x128xf32>
    %c0_25 = arith.constant 0 : index
    %c0_26 = arith.constant 0 : index
    %66 = vector.load %arg5[%c0_25, %c0_26] : memref<1x128xf32, #tpu.memory_space<vmem>>, vector<1x128xf32>
    %67 = arith.addf %65, %66 : vector<1x128xf32>
    %68 = arith.mulf %55, %67 : vector<1x128xf32>
    %69 = arith.addf %64, %68 : vector<1x128xf32>
    %70 = math.tanh %69 : vector<1x128xf32>
    %cst_27 = arith.constant 1.000000e+00 : f32
    %71 = vector.broadcast %cst_27 : f32 to vector<1x128xf32>
    %72 = arith.subf %71, %63 : vector<1x128xf32>
    %73 = arith.mulf %72, %70 : vector<1x128xf32>
    %74 = arith.mulf %63, %40 : vector<1x128xf32>
    %75 = arith.addf %73, %74 : vector<1x128xf32>
    %76 = arith.index_cast %c1_i32 : i32 to index
    %c0_28 = arith.constant 0 : index
    %77 = vector.load %arg11[%76, %c0_28] : memref<8x128xf32, #tpu.memory_space<vmem>>, vector<1x128xf32>
    tpu.vector_store %arg11[%76, %c0_28], %75 {strides = array<i32>} : memref<8x128xf32, #tpu.memory_space<vmem>>, vector<1x128xf32>,
    %c2_i32 = arith.constant 2 : i32
    %78 = arith.index_cast %c2_i32 : i32 to index
    %c0_29 = arith.constant 0 : index
    %79 = vector.load %arg10[%78, %c0_29] : memref<8x384xf32, #tpu.memory_space<vmem>>, vector<1x384xf32>
    %80 = arith.truncf %75 : vector<1x128xf32> to vector<1x128xbf16>
    %c0_30 = arith.constant 0 : index
    %c0_31 = arith.constant 0 : index
    %81 = vector.load %arg3[%c0_30, %c0_31] : memref<128x384xbf16, #tpu.memory_space<vmem>>, vector<128x384xbf16>
    %cst_32 = arith.constant dense<0.000000e+00> : vector<1x384xf32>
    %82 = tpu.matmul %80, %81, %cst_32 {dimension_numbers = #tpu.dot_dimension_numbers<[1], [0], [0], [1], [0, 0, 1, 1], [], []>} : vector<1x128xbf16>, vector<128x384xbf16>, vector<1x384xf32> -> vector<1x384xf32>
    %83 = vector.extract_strided_slice %79 {offsets = [0, 0], sizes = [1, 128], strides = [1, 1]} : vector<1x384xf32> to vector<1x128xf32>
    %84 = vector.extract_strided_slice %82 {offsets = [0, 0], sizes = [1, 128], strides = [1, 1]} : vector<1x384xf32> to vector<1x128xf32>
    %85 = arith.addf %83, %84 : vector<1x128xf32>
    %86 = arith.negf %85 : vector<1x128xf32>
    %87 = math.exp %86 : vector<1x128xf32>
    %cst_33 = arith.constant 1.000000e+00 : f32
    %88 = vector.broadcast %cst_33 : f32 to vector<1x128xf32>
    %89 = arith.addf %88, %87 : vector<1x128xf32>
    %90 = arith.divf %88, %89 : vector<1x128xf32>
    %91 = vector.extract_strided_slice %79 {offsets = [0, 128], sizes = [1, 128], strides = [1, 1]} : vector<1x384xf32> to vector<1x128xf32>
    %92 = vector.extract_strided_slice %82 {offsets = [0, 128], sizes = [1, 128], strides = [1, 1]} : vector<1x384xf32> to vector<1x128xf32>
    %93 = arith.addf %91, %92 : vector<1x128xf32>
    %94 = arith.negf %93 : vector<1x128xf32>
    %95 = math.exp %94 : vector<1x128xf32>
    %cst_34 = arith.constant 1.000000e+00 : f32
    %96 = vector.broadcast %cst_34 : f32 to vector<1x128xf32>
    %97 = arith.addf %96, %95 : vector<1x128xf32>
    %98 = arith.divf %96, %97 : vector<1x128xf32>
    %99 = vector.extract_strided_slice %79 {offsets = [0, 256], sizes = [1, 128], strides = [1, 1]} : vector<1x384xf32> to vector<1x128xf32>
    %100 = vector.extract_strided_slice %82 {offsets = [0, 256], sizes = [1, 128], strides = [1, 1]} : vector<1x384xf32> to vector<1x128xf32>
    %c0_35 = arith.constant 0 : index
    %c0_36 = arith.constant 0 : index
    %101 = vector.load %arg5[%c0_35, %c0_36] : memref<1x128xf32, #tpu.memory_space<vmem>>, vector<1x128xf32>
    %102 = arith.addf %100, %101 : vector<1x128xf32>
    %103 = arith.mulf %90, %102 : vector<1x128xf32>
    %104 = arith.addf %99, %103 : vector<1x128xf32>
    %105 = math.tanh %104 : vector<1x128xf32>
    %cst_37 = arith.constant 1.000000e+00 : f32
    %106 = vector.broadcast %cst_37 : f32 to vector<1x128xf32>
    %107 = arith.subf %106, %98 : vector<1x128xf32>
    %108 = arith.mulf %107, %105 : vector<1x128xf32>
    %109 = arith.mulf %98, %75 : vector<1x128xf32>
    %110 = arith.addf %108, %109 : vector<1x128xf32>
    %111 = arith.index_cast %c2_i32 : i32 to index
    %c0_38 = arith.constant 0 : index
    %112 = vector.load %arg11[%111, %c0_38] : memref<8x128xf32, #tpu.memory_space<vmem>>, vector<1x128xf32>
    tpu.vector_store %arg11[%111, %c0_38], %110 {strides = array<i32>} : memref<8x128xf32, #tpu.memory_space<vmem>>, vector<1x128xf32>,
    %c3_i32 = arith.constant 3 : i32
    %113 = arith.index_cast %c3_i32 : i32 to index
    %c0_39 = arith.constant 0 : index
    %114 = vector.load %arg10[%113, %c0_39] : memref<8x384xf32, #tpu.memory_space<vmem>>, vector<1x384xf32>
    %115 = arith.truncf %110 : vector<1x128xf32> to vector<1x128xbf16>
    %c0_40 = arith.constant 0 : index
    %c0_41 = arith.constant 0 : index
    %116 = vector.load %arg3[%c0_40, %c0_41] : memref<128x384xbf16, #tpu.memory_space<vmem>>, vector<128x384xbf16>
    %cst_42 = arith.constant dense<0.000000e+00> : vector<1x384xf32>
    %117 = tpu.matmul %115, %116, %cst_42 {dimension_numbers = #tpu.dot_dimension_numbers<[1], [0], [0], [1], [0, 0, 1, 1], [], []>} : vector<1x128xbf16>, vector<128x384xbf16>, vector<1x384xf32> -> vector<1x384xf32>
    %118 = vector.extract_strided_slice %114 {offsets = [0, 0], sizes = [1, 128], strides = [1, 1]} : vector<1x384xf32> to vector<1x128xf32>
    %119 = vector.extract_strided_slice %117 {offsets = [0, 0], sizes = [1, 128], strides = [1, 1]} : vector<1x384xf32> to vector<1x128xf32>
    %120 = arith.addf %118, %119 : vector<1x128xf32>
    %121 = arith.negf %120 : vector<1x128xf32>
    %122 = math.exp %121 : vector<1x128xf32>
    %cst_43 = arith.constant 1.000000e+00 : f32
    %123 = vector.broadcast %cst_43 : f32 to vector<1x128xf32>
    %124 = arith.addf %123, %122 : vector<1x128xf32>
    %125 = arith.divf %123, %124 : vector<1x128xf32>
    %126 = vector.extract_strided_slice %114 {offsets = [0, 128], sizes = [1, 128], strides = [1, 1]} : vector<1x384xf32> to vector<1x128xf32>
    %127 = vector.extract_strided_slice %117 {offsets = [0, 128], sizes = [1, 128], strides = [1, 1]} : vector<1x384xf32> to vector<1x128xf32>
    %128 = arith.addf %126, %127 : vector<1x128xf32>
    %129 = arith.negf %128 : vector<1x128xf32>
    %130 = math.exp %129 : vector<1x128xf32>
    %cst_44 = arith.constant 1.000000e+00 : f32
    %131 = vector.broadcast %cst_44 : f32 to vector<1x128xf32>
    %132 = arith.addf %131, %130 : vector<1x128xf32>
    %133 = arith.divf %131, %132 : vector<1x128xf32>
    %134 = vector.extract_strided_slice %114 {offsets = [0, 256], sizes = [1, 128], strides = [1, 1]} : vector<1x384xf32> to vector<1x128xf32>
    %135 = vector.extract_strided_slice %117 {offsets = [0, 256], sizes = [1, 128], strides = [1, 1]} : vector<1x384xf32> to vector<1x128xf32>
    %c0_45 = arith.constant 0 : index
    %c0_46 = arith.constant 0 : index
    %136 = vector.load %arg5[%c0_45, %c0_46] : memref<1x128xf32, #tpu.memory_space<vmem>>, vector<1x128xf32>
    %137 = arith.addf %135, %136 : vector<1x128xf32>
    %138 = arith.mulf %125, %137 : vector<1x128xf32>
    %139 = arith.addf %134, %138 : vector<1x128xf32>
    %140 = math.tanh %139 : vector<1x128xf32>
    %cst_47 = arith.constant 1.000000e+00 : f32
    %141 = vector.broadcast %cst_47 : f32 to vector<1x128xf32>
    %142 = arith.subf %141, %133 : vector<1x128xf32>
    %143 = arith.mulf %142, %140 : vector<1x128xf32>
    %144 = arith.mulf %133, %110 : vector<1x128xf32>
    %145 = arith.addf %143, %144 : vector<1x128xf32>
    %146 = arith.index_cast %c3_i32 : i32 to index
    %c0_48 = arith.constant 0 : index
    %147 = vector.load %arg11[%146, %c0_48] : memref<8x128xf32, #tpu.memory_space<vmem>>, vector<1x128xf32>
    tpu.vector_store %arg11[%146, %c0_48], %145 {strides = array<i32>} : memref<8x128xf32, #tpu.memory_space<vmem>>, vector<1x128xf32>,
    %c4_i32 = arith.constant 4 : i32
    %148 = arith.index_cast %c4_i32 : i32 to index
    %c0_49 = arith.constant 0 : index
    %149 = vector.load %arg10[%148, %c0_49] : memref<8x384xf32, #tpu.memory_space<vmem>>, vector<1x384xf32>
    %150 = arith.truncf %145 : vector<1x128xf32> to vector<1x128xbf16>
    %c0_50 = arith.constant 0 : index
    %c0_51 = arith.constant 0 : index
    %151 = vector.load %arg3[%c0_50, %c0_51] : memref<128x384xbf16, #tpu.memory_space<vmem>>, vector<128x384xbf16>
    %cst_52 = arith.constant dense<0.000000e+00> : vector<1x384xf32>
    %152 = tpu.matmul %150, %151, %cst_52 {dimension_numbers = #tpu.dot_dimension_numbers<[1], [0], [0], [1], [0, 0, 1, 1], [], []>} : vector<1x128xbf16>, vector<128x384xbf16>, vector<1x384xf32> -> vector<1x384xf32>
    %153 = vector.extract_strided_slice %149 {offsets = [0, 0], sizes = [1, 128], strides = [1, 1]} : vector<1x384xf32> to vector<1x128xf32>
    %154 = vector.extract_strided_slice %152 {offsets = [0, 0], sizes = [1, 128], strides = [1, 1]} : vector<1x384xf32> to vector<1x128xf32>
    %155 = arith.addf %153, %154 : vector<1x128xf32>
    %156 = arith.negf %155 : vector<1x128xf32>
    %157 = math.exp %156 : vector<1x128xf32>
    %cst_53 = arith.constant 1.000000e+00 : f32
    %158 = vector.broadcast %cst_53 : f32 to vector<1x128xf32>
    %159 = arith.addf %158, %157 : vector<1x128xf32>
    %160 = arith.divf %158, %159 : vector<1x128xf32>
    %161 = vector.extract_strided_slice %149 {offsets = [0, 128], sizes = [1, 128], strides = [1, 1]} : vector<1x384xf32> to vector<1x128xf32>
    %162 = vector.extract_strided_slice %152 {offsets = [0, 128], sizes = [1, 128], strides = [1, 1]} : vector<1x384xf32> to vector<1x128xf32>
    %163 = arith.addf %161, %162 : vector<1x128xf32>
    %164 = arith.negf %163 : vector<1x128xf32>
    %165 = math.exp %164 : vector<1x128xf32>
    %cst_54 = arith.constant 1.000000e+00 : f32
    %166 = vector.broadcast %cst_54 : f32 to vector<1x128xf32>
    %167 = arith.addf %166, %165 : vector<1x128xf32>
    %168 = arith.divf %166, %167 : vector<1x128xf32>
    %169 = vector.extract_strided_slice %149 {offsets = [0, 256], sizes = [1, 128], strides = [1, 1]} : vector<1x384xf32> to vector<1x128xf32>
    %170 = vector.extract_strided_slice %152 {offsets = [0, 256], sizes = [1, 128], strides = [1, 1]} : vector<1x384xf32> to vector<1x128xf32>
    %c0_55 = arith.constant 0 : index
    %c0_56 = arith.constant 0 : index
    %171 = vector.load %arg5[%c0_55, %c0_56] : memref<1x128xf32, #tpu.memory_space<vmem>>, vector<1x128xf32>
    %172 = arith.addf %170, %171 : vector<1x128xf32>
    %173 = arith.mulf %160, %172 : vector<1x128xf32>
    %174 = arith.addf %169, %173 : vector<1x128xf32>
    %175 = math.tanh %174 : vector<1x128xf32>
    %cst_57 = arith.constant 1.000000e+00 : f32
    %176 = vector.broadcast %cst_57 : f32 to vector<1x128xf32>
    %177 = arith.subf %176, %168 : vector<1x128xf32>
    %178 = arith.mulf %177, %175 : vector<1x128xf32>
    %179 = arith.mulf %168, %145 : vector<1x128xf32>
    %180 = arith.addf %178, %179 : vector<1x128xf32>
    %181 = arith.index_cast %c4_i32 : i32 to index
    %c0_58 = arith.constant 0 : index
    %182 = vector.load %arg11[%181, %c0_58] : memref<8x128xf32, #tpu.memory_space<vmem>>, vector<1x128xf32>
    tpu.vector_store %arg11[%181, %c0_58], %180 {strides = array<i32>} : memref<8x128xf32, #tpu.memory_space<vmem>>, vector<1x128xf32>,
    %c5_i32 = arith.constant 5 : i32
    %183 = arith.index_cast %c5_i32 : i32 to index
    %c0_59 = arith.constant 0 : index
    %184 = vector.load %arg10[%183, %c0_59] : memref<8x384xf32, #tpu.memory_space<vmem>>, vector<1x384xf32>
    %185 = arith.truncf %180 : vector<1x128xf32> to vector<1x128xbf16>
    %c0_60 = arith.constant 0 : index
    %c0_61 = arith.constant 0 : index
    %186 = vector.load %arg3[%c0_60, %c0_61] : memref<128x384xbf16, #tpu.memory_space<vmem>>, vector<128x384xbf16>
    %cst_62 = arith.constant dense<0.000000e+00> : vector<1x384xf32>
    %187 = tpu.matmul %185, %186, %cst_62 {dimension_numbers = #tpu.dot_dimension_numbers<[1], [0], [0], [1], [0, 0, 1, 1], [], []>} : vector<1x128xbf16>, vector<128x384xbf16>, vector<1x384xf32> -> vector<1x384xf32>
    %188 = vector.extract_strided_slice %184 {offsets = [0, 0], sizes = [1, 128], strides = [1, 1]} : vector<1x384xf32> to vector<1x128xf32>
    %189 = vector.extract_strided_slice %187 {offsets = [0, 0], sizes = [1, 128], strides = [1, 1]} : vector<1x384xf32> to vector<1x128xf32>
    %190 = arith.addf %188, %189 : vector<1x128xf32>
    %191 = arith.negf %190 : vector<1x128xf32>
    %192 = math.exp %191 : vector<1x128xf32>
    %cst_63 = arith.constant 1.000000e+00 : f32
    %193 = vector.broadcast %cst_63 : f32 to vector<1x128xf32>
    %194 = arith.addf %193, %192 : vector<1x128xf32>
    %195 = arith.divf %193, %194 : vector<1x128xf32>
    %196 = vector.extract_strided_slice %184 {offsets = [0, 128], sizes = [1, 128], strides = [1, 1]} : vector<1x384xf32> to vector<1x128xf32>
    %197 = vector.extract_strided_slice %187 {offsets = [0, 128], sizes = [1, 128], strides = [1, 1]} : vector<1x384xf32> to vector<1x128xf32>
    %198 = arith.addf %196, %197 : vector<1x128xf32>
    %199 = arith.negf %198 : vector<1x128xf32>
    %200 = math.exp %199 : vector<1x128xf32>
    %cst_64 = arith.constant 1.000000e+00 : f32
    %201 = vector.broadcast %cst_64 : f32 to vector<1x128xf32>
    %202 = arith.addf %201, %200 : vector<1x128xf32>
    %203 = arith.divf %201, %202 : vector<1x128xf32>
    %204 = vector.extract_strided_slice %184 {offsets = [0, 256], sizes = [1, 128], strides = [1, 1]} : vector<1x384xf32> to vector<1x128xf32>
    %205 = vector.extract_strided_slice %187 {offsets = [0, 256], sizes = [1, 128], strides = [1, 1]} : vector<1x384xf32> to vector<1x128xf32>
    %c0_65 = arith.constant 0 : index
    %c0_66 = arith.constant 0 : index
    %206 = vector.load %arg5[%c0_65, %c0_66] : memref<1x128xf32, #tpu.memory_space<vmem>>, vector<1x128xf32>
    %207 = arith.addf %205, %206 : vector<1x128xf32>
    %208 = arith.mulf %195, %207 : vector<1x128xf32>
    %209 = arith.addf %204, %208 : vector<1x128xf32>
    %210 = math.tanh %209 : vector<1x128xf32>
    %cst_67 = arith.constant 1.000000e+00 : f32
    %211 = vector.broadcast %cst_67 : f32 to vector<1x128xf32>
    %212 = arith.subf %211, %203 : vector<1x128xf32>
    %213 = arith.mulf %212, %210 : vector<1x128xf32>
    %214 = arith.mulf %203, %180 : vector<1x128xf32>
    %215 = arith.addf %213, %214 : vector<1x128xf32>
    %216 = arith.index_cast %c5_i32 : i32 to index
    %c0_68 = arith.constant 0 : index
    %217 = vector.load %arg11[%216, %c0_68] : memref<8x128xf32, #tpu.memory_space<vmem>>, vector<1x128xf32>
    tpu.vector_store %arg11[%216, %c0_68], %215 {strides = array<i32>} : memref<8x128xf32, #tpu.memory_space<vmem>>, vector<1x128xf32>,
    %c6_i32 = arith.constant 6 : i32
    %218 = arith.index_cast %c6_i32 : i32 to index
    %c0_69 = arith.constant 0 : index
    %219 = vector.load %arg10[%218, %c0_69] : memref<8x384xf32, #tpu.memory_space<vmem>>, vector<1x384xf32>
    %220 = arith.truncf %215 : vector<1x128xf32> to vector<1x128xbf16>
    %c0_70 = arith.constant 0 : index
    %c0_71 = arith.constant 0 : index
    %221 = vector.load %arg3[%c0_70, %c0_71] : memref<128x384xbf16, #tpu.memory_space<vmem>>, vector<128x384xbf16>
    %cst_72 = arith.constant dense<0.000000e+00> : vector<1x384xf32>
    %222 = tpu.matmul %220, %221, %cst_72 {dimension_numbers = #tpu.dot_dimension_numbers<[1], [0], [0], [1], [0, 0, 1, 1], [], []>} : vector<1x128xbf16>, vector<128x384xbf16>, vector<1x384xf32> -> vector<1x384xf32>
    %223 = vector.extract_strided_slice %219 {offsets = [0, 0], sizes = [1, 128], strides = [1, 1]} : vector<1x384xf32> to vector<1x128xf32>
    %224 = vector.extract_strided_slice %222 {offsets = [0, 0], sizes = [1, 128], strides = [1, 1]} : vector<1x384xf32> to vector<1x128xf32>
    %225 = arith.addf %223, %224 : vector<1x128xf32>
    %226 = arith.negf %225 : vector<1x128xf32>
    %227 = math.exp %226 : vector<1x128xf32>
    %cst_73 = arith.constant 1.000000e+00 : f32
    %228 = vector.broadcast %cst_73 : f32 to vector<1x128xf32>
    %229 = arith.addf %228, %227 : vector<1x128xf32>
    %230 = arith.divf %228, %229 : vector<1x128xf32>
    %231 = vector.extract_strided_slice %219 {offsets = [0, 128], sizes = [1, 128], strides = [1, 1]} : vector<1x384xf32> to vector<1x128xf32>
    %232 = vector.extract_strided_slice %222 {offsets = [0, 128], sizes = [1, 128], strides = [1, 1]} : vector<1x384xf32> to vector<1x128xf32>
    %233 = arith.addf %231, %232 : vector<1x128xf32>
    %234 = arith.negf %233 : vector<1x128xf32>
    %235 = math.exp %234 : vector<1x128xf32>
    %cst_74 = arith.constant 1.000000e+00 : f32
    %236 = vector.broadcast %cst_74 : f32 to vector<1x128xf32>
    %237 = arith.addf %236, %235 : vector<1x128xf32>
    %238 = arith.divf %236, %237 : vector<1x128xf32>
    %239 = vector.extract_strided_slice %219 {offsets = [0, 256], sizes = [1, 128], strides = [1, 1]} : vector<1x384xf32> to vector<1x128xf32>
    %240 = vector.extract_strided_slice %222 {offsets = [0, 256], sizes = [1, 128], strides = [1, 1]} : vector<1x384xf32> to vector<1x128xf32>
    %c0_75 = arith.constant 0 : index
    %c0_76 = arith.constant 0 : index
    %241 = vector.load %arg5[%c0_75, %c0_76] : memref<1x128xf32, #tpu.memory_space<vmem>>, vector<1x128xf32>
    %242 = arith.addf %240, %241 : vector<1x128xf32>
    %243 = arith.mulf %230, %242 : vector<1x128xf32>
    %244 = arith.addf %239, %243 : vector<1x128xf32>
    %245 = math.tanh %244 : vector<1x128xf32>
    %cst_77 = arith.constant 1.000000e+00 : f32
    %246 = vector.broadcast %cst_77 : f32 to vector<1x128xf32>
    %247 = arith.subf %246, %238 : vector<1x128xf32>
    %248 = arith.mulf %247, %245 : vector<1x128xf32>
    %249 = arith.mulf %238, %215 : vector<1x128xf32>
    %250 = arith.addf %248, %249 : vector<1x128xf32>
    %251 = arith.index_cast %c6_i32 : i32 to index
    %c0_78 = arith.constant 0 : index
    %252 = vector.load %arg11[%251, %c0_78] : memref<8x128xf32, #tpu.memory_space<vmem>>, vector<1x128xf32>
    tpu.vector_store %arg11[%251, %c0_78], %250 {strides = array<i32>} : memref<8x128xf32, #tpu.memory_space<vmem>>, vector<1x128xf32>,
    %c7_i32 = arith.constant 7 : i32
    %253 = arith.index_cast %c7_i32 : i32 to index
    %c0_79 = arith.constant 0 : index
    %254 = vector.load %arg10[%253, %c0_79] : memref<8x384xf32, #tpu.memory_space<vmem>>, vector<1x384xf32>
    %255 = arith.truncf %250 : vector<1x128xf32> to vector<1x128xbf16>
    %c0_80 = arith.constant 0 : index
    %c0_81 = arith.constant 0 : index
    %256 = vector.load %arg3[%c0_80, %c0_81] : memref<128x384xbf16, #tpu.memory_space<vmem>>, vector<128x384xbf16>
    %cst_82 = arith.constant dense<0.000000e+00> : vector<1x384xf32>
    %257 = tpu.matmul %255, %256, %cst_82 {dimension_numbers = #tpu.dot_dimension_numbers<[1], [0], [0], [1], [0, 0, 1, 1], [], []>} : vector<1x128xbf16>, vector<128x384xbf16>, vector<1x384xf32> -> vector<1x384xf32>
    %258 = vector.extract_strided_slice %254 {offsets = [0, 0], sizes = [1, 128], strides = [1, 1]} : vector<1x384xf32> to vector<1x128xf32>
    %259 = vector.extract_strided_slice %257 {offsets = [0, 0], sizes = [1, 128], strides = [1, 1]} : vector<1x384xf32> to vector<1x128xf32>
    %260 = arith.addf %258, %259 : vector<1x128xf32>
    %261 = arith.negf %260 : vector<1x128xf32>
    %262 = math.exp %261 : vector<1x128xf32>
    %cst_83 = arith.constant 1.000000e+00 : f32
    %263 = vector.broadcast %cst_83 : f32 to vector<1x128xf32>
    %264 = arith.addf %263, %262 : vector<1x128xf32>
    %265 = arith.divf %263, %264 : vector<1x128xf32>
    %266 = vector.extract_strided_slice %254 {offsets = [0, 128], sizes = [1, 128], strides = [1, 1]} : vector<1x384xf32> to vector<1x128xf32>
    %267 = vector.extract_strided_slice %257 {offsets = [0, 128], sizes = [1, 128], strides = [1, 1]} : vector<1x384xf32> to vector<1x128xf32>
    %268 = arith.addf %266, %267 : vector<1x128xf32>
    %269 = arith.negf %268 : vector<1x128xf32>
    %270 = math.exp %269 : vector<1x128xf32>
    %cst_84 = arith.constant 1.000000e+00 : f32
    %271 = vector.broadcast %cst_84 : f32 to vector<1x128xf32>
    %272 = arith.addf %271, %270 : vector<1x128xf32>
    %273 = arith.divf %271, %272 : vector<1x128xf32>
    %274 = vector.extract_strided_slice %254 {offsets = [0, 256], sizes = [1, 128], strides = [1, 1]} : vector<1x384xf32> to vector<1x128xf32>
    %275 = vector.extract_strided_slice %257 {offsets = [0, 256], sizes = [1, 128], strides = [1, 1]} : vector<1x384xf32> to vector<1x128xf32>
    %c0_85 = arith.constant 0 : index
    %c0_86 = arith.constant 0 : index
    %276 = vector.load %arg5[%c0_85, %c0_86] : memref<1x128xf32, #tpu.memory_space<vmem>>, vector<1x128xf32>
    %277 = arith.addf %275, %276 : vector<1x128xf32>
    %278 = arith.mulf %265, %277 : vector<1x128xf32>
    %279 = arith.addf %274, %278 : vector<1x128xf32>
    %280 = math.tanh %279 : vector<1x128xf32>
    %cst_87 = arith.constant 1.000000e+00 : f32
    %281 = vector.broadcast %cst_87 : f32 to vector<1x128xf32>
    %282 = arith.subf %281, %273 : vector<1x128xf32>
    %283 = arith.mulf %282, %280 : vector<1x128xf32>
    %284 = arith.mulf %273, %250 : vector<1x128xf32>
    %285 = arith.addf %283, %284 : vector<1x128xf32>
    %286 = arith.index_cast %c7_i32 : i32 to index
    %c0_88 = arith.constant 0 : index
    %287 = vector.load %arg11[%286, %c0_88] : memref<8x128xf32, #tpu.memory_space<vmem>>, vector<1x128xf32>
    tpu.vector_store %arg11[%286, %c0_88], %285 {strides = array<i32>} : memref<8x128xf32, #tpu.memory_space<vmem>>, vector<1x128xf32>,
    %c8_i32 = arith.constant 8 : i32
    %c0_89 = arith.constant 0 : index
    %c0_90 = arith.constant 0 : index
    %288 = vector.load %arg11[%c0_89, %c0_90] : memref<8x128xf32, #tpu.memory_space<vmem>>, vector<8x128xf32>
    %289 = arith.truncf %288 : vector<8x128xf32> to vector<8x128xbf16>
    %c0_91 = arith.constant 0 : index
    %c0_92 = arith.constant 0 : index
    %290 = vector.load %arg6[%c0_91, %c0_92] : memref<128x128xbf16, #tpu.memory_space<vmem>>, vector<128x128xbf16>
    %cst_93 = arith.constant dense<0.000000e+00> : vector<8x128xf32>
    %291 = tpu.matmul %289, %290, %cst_93 {dimension_numbers = #tpu.dot_dimension_numbers<[1], [0], [0], [1], [0, 0, 1, 1], [], []>} : vector<8x128xbf16>, vector<128x128xbf16>, vector<8x128xf32> -> vector<8x128xf32>
    %c0_94 = arith.constant 0 : index
    %c0_95 = arith.constant 0 : index
    %292 = vector.load %arg7[%c0_94, %c0_95] : memref<1x128xf32, #tpu.memory_space<vmem>>, vector<1x128xf32>
    %293 = vector.broadcast %292 : vector<1x128xf32> to vector<8x128xf32>
    %294 = arith.addf %291, %293 : vector<8x128xf32>
    %c0_96 = arith.constant 0 : index
    %c0_97 = arith.constant 0 : index
    %295 = vector.load %arg8[%c0_96, %c0_97] : memref<8x128xf32, #tpu.memory_space<vmem>>, vector<8x128xf32>
    tpu.vector_store %arg8[%c0_96, %c0_97], %294 {strides = array<i32>} : memref<8x128xf32, #tpu.memory_space<vmem>>, vector<8x128xf32>,
    %c0_98 = arith.constant 0 : index
    %c0_99 = arith.constant 0 : index
    %296 = vector.load %arg9[%c0_98, %c0_99] : memref<1x128xf32, #tpu.memory_space<vmem>>, vector<1x128xf32>
    tpu.vector_store %arg9[%c0_98, %c0_99], %285 {strides = array<i32>} : memref<1x128xf32, #tpu.memory_space<vmem>>, vector<1x128xf32>,
    return
  }
}

</mosaic_0001>

<llo_original>
// kernel: tpu_custom_call.1
$region0: #{tpu_custom_call.1}
  #allocation0 [shape = 'u32[]', space=smem, size = 0x4, offset = 0x4, fixed_abs, tag = 'smem constant byte address 0x4 - core index']
  #allocation1 [shape = 'u32[144,128]{1,0:T(1,128)}', space=vmem, size = 0x12000, scoped, tag = 'internal scratch']
  #allocation2 [shape = 'f32[8,384]{1,0:T(8,128)}', space=vmem, size = 0x3000, scoped, tag = 'scratch operand']
  #allocation3 [shape = 'f32[8,128]{1,0:T(8,128)}', space=vmem, size = 0x1000, scoped, tag = 'scratch operand']
  %s0 = inlined_call_operand.hbm [shape: bf16[8,128], index: 0, kind: input, shape index: {}]
  %s1 = inlined_call_operand.vmem [shape: f32[1,128], index: 1, kind: input, shape index: {}]
  %s2 = inlined_call_operand.hbm [shape: bf16[128,384], index: 2, kind: input, shape index: {}]
  %s3 = inlined_call_operand.hbm [shape: bf16[128,384], index: 3, kind: input, shape index: {}]
  %s4 = inlined_call_operand.vmem [shape: f32[1,384], index: 4, kind: input, shape index: {}]
  %s5 = inlined_call_operand.vmem [shape: f32[1,128], index: 5, kind: input, shape index: {}]
  %s6 = inlined_call_operand.hbm [shape: bf16[128,128], index: 6, kind: input, shape index: {}]
  %s7 = inlined_call_operand.vmem [shape: f32[1,128], index: 7, kind: input, shape index: {}]
  %s8 = inlined_call_operand.hbm [shape: f32[8,128], index: 8, kind: output, shape index: {0}]
  %s9 = inlined_call_operand.hbm [shape: f32[1,128], index: 9, kind: output, shape index: {1}]
  %10 = xla_tuple %s8, %s9
  %s11 = sld [smem:[#allocation0]]
  $region66: #{tpu_custom_call.1} parent=0
    _
  %s13 = ssub.s32 1, %s11
  %s14 = scalar_select 0, %s13, %s11
  $region1: #{tpu_custom_call.1} parent=0
    #allocation4 [shape = 'u8[2048]{0}', space=vmem, size = 0x800, scoped, tag = 'input window, operand 0, single buffered']
    #allocation5 [shape = 's32[1]{0}', space=sflag, size = 0x4, scoped, tag = 'scoped memory for tpu_custom_call.1']
    #allocation6 [shape = 's32[1]{0}', space=sflag, size = 0x4, scoped, tag = 'scoped memory for tpu_custom_call.1']
    #allocation7 [shape = 'u8[98304]{0}', space=vmem, size = 0x18000, scoped, tag = 'input window, operand 2, single buffered']
    #allocation8 [shape = 's32[1]{0}', space=sflag, size = 0x4, scoped, tag = 'scoped memory for tpu_custom_call.1']
    #allocation9 [shape = 'u8[98304]{0}', space=vmem, size = 0x18000, scoped, tag = 'input window, operand 3, single buffered']
    #allocation10 [shape = 'u8[32768]{0}', space=vmem, size = 0x8000, scoped, tag = 'input window, operand 6, single buffered']
    #allocation11 [shape = 's32[1]{0}', space=sflag, size = 0x4, scoped, tag = 'scoped memory for tpu_custom_call.1']
    #allocation12 [shape = 'u8[4096]{0}', space=vmem, size = 0x1000, scoped, tag = 'output window, operand 0, single buffered']
    #allocation13 [shape = 'u8[512]{0}', space=vmem, size = 0x400, scoped, tag = 'output window, operand 1, single buffered']
    #allocation14 [shape = 's32[1]{0}', space=sflag, size = 0x4, scoped, tag = 'scoped memory for tpu_custom_call.1']
    %15 = vsyncpa [#allocation5], 0
    %16 = vsyncpa [#allocation8], 0
    %17 = vsyncpa [#allocation11], 0
    %18 = vsyncpa [#allocation6], 0
    %19 = vsyncpa [#allocation14], 0
    // Predicated region
    $region2: #{tpu_custom_call.1} parent=1 // pred_check
      _
    $region3: #{tpu_custom_call.1} parent=1 // pred_check_branch
      %21 = sbr.rel (0) target = $region5
    $region4: #{tpu_custom_call.1} parent=1 // pred_region
      %s23 = ssub.s32 64, 64
      %24 = vsyncadd [#allocation5], %s23
      %s26 = sshll.u32 [#allocation4], 4
      %s27 = int_to_ptr.vmem [resolvable:$true] %s26
      %29 = dma.hbm_to_vmem [thread:$0]  %s0, 64, %s27, [#allocation5]
    $region5: #{tpu_custom_call.1} parent=1 // pred_fallthru
      _
    // Predicated region
    $region6: #{tpu_custom_call.1} parent=1 // pred_check
      _
    $region7: #{tpu_custom_call.1} parent=1 // pred_check_branch
      %31 = sbr.rel (0) target = $region9
    $region8: #{tpu_custom_call.1} parent=1 // pred_region
      _
    $region9: #{tpu_custom_call.1} parent=1 // pred_fallthru
      _
    // Predicated region
    $region10: #{tpu_custom_call.1} parent=1 // pred_check
      _
    $region11: #{tpu_custom_call.1} parent=1 // pred_check_branch
      %33 = sbr.rel (0) target = $region13
    $region12: #{tpu_custom_call.1} parent=1 // pred_region
      %s35 = ssub.s32 3072, 3072
      %36 = vsyncadd [#allocation8], %s35
      %s37 = sshll.u32 [#allocation7], 4
      %s38 = int_to_ptr.vmem [resolvable:$true] %s37
      %43 = dma.hbm_to_vmem [thread:$0]  %s2, 3072, %s38, [#allocation8], 192, 192, 12
    $region13: #{tpu_custom_call.1} parent=1 // pred_fallthru
      _
    // Predicated region
    $region14: #{tpu_custom_call.1} parent=1 // pred_check
      _
    $region15: #{tpu_custom_call.1} parent=1 // pred_check_branch
      %45 = sbr.rel (0) target = $region17
    $region16: #{tpu_custom_call.1} parent=1 // pred_region
      %s47 = ssub.s32 3072, 3072
      %48 = vsyncadd [#allocation8], %s47
      %s49 = sshll.u32 [#allocation9], 4
      %s50 = int_to_ptr.vmem [resolvable:$true] %s49
      %55 = dma.hbm_to_vmem [thread:$0]  %s3, 3072, %s50, [#allocation8], 192, 192, 12
    $region17: #{tpu_custom_call.1} parent=1 // pred_fallthru
      _
    // Predicated region
    $region18: #{tpu_custom_call.1} parent=1 // pred_check
      _
    $region19: #{tpu_custom_call.1} parent=1 // pred_check_branch
      %57 = sbr.rel (0) target = $region21
    $region20: #{tpu_custom_call.1} parent=1 // pred_region
      _
    $region21: #{tpu_custom_call.1} parent=1 // pred_fallthru
      _
    // Predicated region
    $region22: #{tpu_custom_call.1} parent=1 // pred_check
      _
    $region23: #{tpu_custom_call.1} parent=1 // pred_check_branch
      %59 = sbr.rel (0) target = $region25
    $region24: #{tpu_custom_call.1} parent=1 // pred_region
      _
    $region25: #{tpu_custom_call.1} parent=1 // pred_fallthru
      _
    // Predicated region
    $region26: #{tpu_custom_call.1} parent=1 // pred_check
      _
    $region27: #{tpu_custom_call.1} parent=1 // pred_check_branch
      %61 = sbr.rel (0) target = $region29
    $region28: #{tpu_custom_call.1} parent=1 // pred_region
      %s63 = ssub.s32 1024, 1024
      %64 = vsyncadd [#allocation11], %s63
      %s65 = sshll.u32 [#allocation10], 4
      %s66 = int_to_ptr.vmem [resolvable:$true] %s65
      %71 = dma.hbm_to_vmem [thread:$0]  %s6, 1024, %s66, [#allocation11], 64, 64, 4
    $region29: #{tpu_custom_call.1} parent=1 // pred_fallthru
      _
    // Predicated region
    $region30: #{tpu_custom_call.1} parent=1 // pred_check
      _
    $region31: #{tpu_custom_call.1} parent=1 // pred_check_branch
      %73 = sbr.rel (0) target = $region33
    $region32: #{tpu_custom_call.1} parent=1 // pred_region
      _
    $region33: #{tpu_custom_call.1} parent=1 // pred_fallthru
      _
    // Predicated region
    $region34: #{tpu_custom_call.1} parent=1 // pred_check
      _
    $region35: #{tpu_custom_call.1} parent=1 // pred_check_branch
      %75 = sbr.rel (0) target = $region37
    $region36: #{tpu_custom_call.1} parent=1 // pred_region
      %76 = dma.done [#allocation5], 64
    $region37: #{tpu_custom_call.1} parent=1 // pred_fallthru
      _
    // Predicated region
    $region38: #{tpu_custom_call.1} parent=1 // pred_check
      _
    $region39: #{tpu_custom_call.1} parent=1 // pred_check_branch
      %78 = sbr.rel (0) target = $region41
    $region40: #{tpu_custom_call.1} parent=1 // pred_region
      %79 = dma.done [#allocation8], 3072
    $region41: #{tpu_custom_call.1} parent=1 // pred_fallthru
      _
    // Predicated region
    $region42: #{tpu_custom_call.1} parent=1 // pred_check
      _
    $region43: #{tpu_custom_call.1} parent=1 // pred_check_branch
      %81 = sbr.rel (0) target = $region45
    $region44: #{tpu_custom_call.1} parent=1 // pred_region
      %82 = dma.done [#allocation8], 3072
    $region45: #{tpu_custom_call.1} parent=1 // pred_fallthru
      _
    // Predicated region
    $region46: #{tpu_custom_call.1} parent=1 // pred_check
      _
    $region47: #{tpu_custom_call.1} parent=1 // pred_check_branch
      %84 = sbr.rel (0) target = $region49
    $region48: #{tpu_custom_call.1} parent=1 // pred_region
      %85 = dma.done [#allocation11], 1024
    $region49: #{tpu_custom_call.1} parent=1 // pred_fallthru
      _
    %v87 = vld [vmem:[#allocation4] sm:$0xf]
    %v88 = vld [vmem:[#allocation7] sm:$0xff]
    %v89 = vld [vmem:[#allocation7 + $0x8] sm:$0xf]
    %v90 = vld [vmem:[#allocation7 + $0xc] sm:$0xff]
    %v91 = vld [vmem:[#allocation7 + $0x14] sm:$0xf]
    %v92 = vld [vmem:[#allocation7 + $0x18] sm:$0xff]
    %v93 = vld [vmem:[#allocation7 + $0x20] sm:$0xf]
    %v94 = vld [vmem:[#allocation7 + $0x24] sm:$0xff]
    %v95 = vld [vmem:[#allocation7 + $0x2c] sm:$0xf]
    %v96 = vld [vmem:[#allocation7 + $0x30] sm:$0xff]
    %v97 = vld [vmem:[#allocation7 + $0x38] sm:$0xf]
    %v98 = vld [vmem:[#allocation7 + $0x3c] sm:$0xff]
    %v99 = vld [vmem:[#allocation7 + $0x44] sm:$0xf]
    %v100 = vld [vmem:[#allocation7 + $0x48] sm:$0xff]
    %v101 = vld [vmem:[#allocation7 + $0x50] sm:$0xf]
    %v102 = vld [vmem:[#allocation7 + $0x54] sm:$0xff]
    %v103 = vld [vmem:[#allocation7 + $0x5c] sm:$0xf]
    %v104 = vld [vmem:[#allocation7 + $0x60] sm:$0xff]
    %v105 = vld [vmem:[#allocation7 + $0x68] sm:$0xf]
    %v106 = vld [vmem:[#allocation7 + $0x6c] sm:$0xff]
    %v107 = vld [vmem:[#allocation7 + $0x74] sm:$0xf]
    %v108 = vld [vmem:[#allocation7 + $0x78] sm:$0xff]
    %v109 = vld [vmem:[#allocation7 + $0x80] sm:$0xf]
    %v110 = vld [vmem:[#allocation7 + $0x84] sm:$0xff]
    %v111 = vld [vmem:[#allocation7 + $0x8c] sm:$0xf]
    %v112 = vld [vmem:[#allocation7 + $0x90] sm:$0xff]
    %v113 = vld [vmem:[#allocation7 + $0x98] sm:$0xf]
    %v114 = vld [vmem:[#allocation7 + $0x9c] sm:$0xff]
    %v115 = vld [vmem:[#allocation7 + $0xa4] sm:$0xf]
    %v116 = vld [vmem:[#allocation7 + $0xa8] sm:$0xff]
    %v117 = vld [vmem:[#allocation7 + $0xb0] sm:$0xf]
    %v118 = vld [vmem:[#allocation7 + $0xb4] sm:$0xff]
    %v119 = vld [vmem:[#allocation7 + $0xbc] sm:$0xf]
    %v120 = vld [vmem:[%s4] sm:$0x7]
    %v122 = vlaneseq
    %v123 = vshrl.u32 %v122, 7
    %v124 = vsub.s32 0, %v123
    %v125 = vrot.slane %v120, %v124
    %v126 = vlaneseq
    %v127 = vshrl.u32 %v126, 7
    %v128 = vsub.s32 1, %v127
    %v129 = vrot.slane %v120, %v128
    %v130 = vlaneseq
    %v131 = vshrl.u32 %v130, 7
    %v132 = vsub.s32 2, %v131
    %v133 = vrot.slane %v120, %v132
    %v169 = vunpack.c.l.b16 %v88
    %v170 = vunpack.c.h.b16 %v88
    %v171 = vunpack.c.l.b16 %v89
    %v172 = vunpack.c.l.b16 %v90
    %v173 = vunpack.c.h.b16 %v90
    %v174 = vunpack.c.l.b16 %v91
    %v175 = vunpack.c.l.b16 %v92
    %v176 = vunpack.c.h.b16 %v92
    %v177 = vunpack.c.l.b16 %v93
    %v178 = vunpack.c.l.b16 %v94
    %v179 = vunpack.c.h.b16 %v94
    %v180 = vunpack.c.l.b16 %v95
    %v181 = vunpack.c.l.b16 %v96
    %v182 = vunpack.c.h.b16 %v96
    %v183 = vunpack.c.l.b16 %v97
    %v184 = vunpack.c.l.b16 %v98
    %v185 = vunpack.c.h.b16 %v98
    %v186 = vunpack.c.l.b16 %v99
    %v187 = vunpack.c.l.b16 %v100
    %v188 = vunpack.c.h.b16 %v100
    %v189 = vunpack.c.l.b16 %v101
    %v190 = vunpack.c.l.b16 %v102
    %v191 = vunpack.c.h.b16 %v102
    %v192 = vunpack.c.l.b16 %v103
    %v193 = vunpack.c.l.b16 %v104
    %v194 = vunpack.c.h.b16 %v104
    %v195 = vunpack.c.l.b16 %v105
    %v196 = vunpack.c.l.b16 %v106
    %v197 = vunpack.c.h.b16 %v106
    %v198 = vunpack.c.l.b16 %v107
    %v199 = vunpack.c.l.b16 %v108
    %v200 = vunpack.c.h.b16 %v108
    %v201 = vunpack.c.l.b16 %v109
    %v202 = vunpack.c.l.b16 %v110
    %v203 = vunpack.c.h.b16 %v110
    %v204 = vunpack.c.l.b16 %v111
    %v205 = vunpack.c.l.b16 %v112
    %v206 = vunpack.c.h.b16 %v112
    %v207 = vunpack.c.l.b16 %v113
    %v208 = vunpack.c.l.b16 %v114
    %v209 = vunpack.c.h.b16 %v114
    %v210 = vunpack.c.l.b16 %v115
    %v211 = vunpack.c.l.b16 %v116
    %v212 = vunpack.c.h.b16 %v116
    %v213 = vunpack.c.l.b16 %v117
    %v214 = vunpack.c.l.b16 %v118
    %v215 = vunpack.c.h.b16 %v118
    %v216 = vunpack.c.l.b16 %v119
    %v217 = vpack.c.b16 %v172, %v169
    %v218 = vpack.c.b16 %v173, %v170
    %v219 = vpack.c.b16 %v174, %v171
    %v220 = vpack.c.b16 %v178, %v175
    %v221 = vpack.c.b16 %v179, %v176
    %v222 = vpack.c.b16 %v180, %v177
    %v223 = vpack.c.b16 %v184, %v181
    %v224 = vpack.c.b16 %v185, %v182
    %v225 = vpack.c.b16 %v186, %v183
    %v226 = vpack.c.b16 %v190, %v187
    %v227 = vpack.c.b16 %v191, %v188
    %v228 = vpack.c.b16 %v192, %v189
    %v229 = vpack.c.b16 %v196, %v193
    %v230 = vpack.c.b16 %v197, %v194
    %v231 = vpack.c.b16 %v198, %v195
    %v232 = vpack.c.b16 %v202, %v199
    %v233 = vpack.c.b16 %v203, %v200
    %v234 = vpack.c.b16 %v204, %v201
    %v235 = vpack.c.b16 %v208, %v205
    %v236 = vpack.c.b16 %v209, %v206
    %v237 = vpack.c.b16 %v210, %v207
    %v238 = vpack.c.b16 %v214, %v211
    %v239 = vpack.c.b16 %v215, %v212
    %v240 = vpack.c.b16 %v216, %v213
    %265 = vmatprep.subr.bf16.mxu0 %v218
    %266 = vmatpush1.bf16.msra.mxu0 %v217
    %267 = vmatprep.subr.bf16.mxu0 %v221
    %268 = vmatpush1.bf16.msra.mxu0 %v220
    %269 = vmatprep.subr.bf16.mxu0 %v224
    %270 = vmatpush1.bf16.msra.mxu0 %v223
    %271 = vmatprep.subr.bf16.mxu0 %v227
    %272 = vmatpush1.bf16.msra.mxu0 %v226
    %273 = vmatprep.subr.bf16.mxu0 %v230
    %274 = vmatpush1.bf16.msra.mxu0 %v229
    %275 = vmatprep.subr.bf16.mxu0 %v233
    %276 = vmatpush1.bf16.msra.mxu0 %v232
    %277 = vmatprep.subr.bf16.mxu0 %v236
    %278 = vmatpush1.bf16.msra.mxu0 %v235
    %279 = vmatprep.subr.bf16.mxu0 %v239
    %280 = vmatpush1.bf16.msra.mxu0 %v238
    %281 = vmatprep.subr.bf16.mxu0 0
    %282 = vmatpush1.bf16.msra.mxu0 0
    %283 = vmatprep.subr.bf16.mxu0 0
    %284 = vmatpush1.bf16.msra.mxu0 0
    %285 = vmatprep.subr.bf16.mxu0 0
    %286 = vmatpush1.bf16.msra.mxu0 0
    %287 = vmatprep.subr.bf16.mxu0 0
    %288 = vmatpush1.bf16.msra.mxu0 0
    %289 = vmatprep.subr.bf16.mxu0 0
    %290 = vmatpush1.bf16.msra.mxu0 0
    %291 = vmatprep.subr.bf16.mxu0 0
    %292 = vmatpush1.bf16.msra.mxu0 0
    %293 = vmatprep.subr.bf16.mxu0 0
    %294 = vmatpush1.bf16.msra.mxu0 0
    %295 = vmatprep.subr.bf16.mxu0 0
    %296 = vmatpush1.bf16.msra.mxu0 0
    %297 = vmatprep.mubr.bf16.mxu0 0
    %298 = vmatmul.mubr.bf16.gmra.mrb[0].mxu0 %v87
    %v299 = vpop.f32.mrb[0].mxu0
    %v300 = vadd.f32 %v125, %v299
    %v301 = vpop.f32.mrb[0].mxu0
    %v302 = vadd.f32 %v129, %v301
    %v303 = vpop.f32.mrb[0].mxu0
    %v304 = vpop.f32.mrb[0].mxu0
    %305 = vdwg.mxu0
    %306 = vmatprep.subr.bf16.mxu0 0
    %307 = vmatpush1.bf16.msra.mxu0 %v219
    %308 = vmatprep.subr.bf16.mxu0 0
    %309 = vmatpush1.bf16.msra.mxu0 %v222
    %310 = vmatprep.subr.bf16.mxu0 0
    %311 = vmatpush1.bf16.msra.mxu0 %v225
    %312 = vmatprep.subr.bf16.mxu0 0
    %313 = vmatpush1.bf16.msra.mxu0 %v228
    %314 = vmatprep.subr.bf16.mxu0 0
    %315 = vmatpush1.bf16.msra.mxu0 %v231
    %316 = vmatprep.subr.bf16.mxu0 0
    %317 = vmatpush1.bf16.msra.mxu0 %v234
    %318 = vmatprep.subr.bf16.mxu0 0
    %319 = vmatpush1.bf16.msra.mxu0 %v237
    %320 = vmatprep.subr.bf16.mxu0 0
    %321 = vmatpush1.bf16.msra.mxu0 %v240
    %322 = vmatprep.subr.bf16.mxu0 0
    %323 = vmatpush1.bf16.msra.mxu0 0
    %324 = vmatprep.subr.bf16.mxu0 0
    %325 = vmatpush1.bf16.msra.mxu0 0
    %326 = vmatprep.subr.bf16.mxu0 0
    %327 = vmatpush1.bf16.msra.mxu0 0
    %328 = vmatprep.subr.bf16.mxu0 0
    %329 = vmatpush1.bf16.msra.mxu0 0
    %330 = vmatprep.subr.bf16.mxu0 0
    %331 = vmatpush1.bf16.msra.mxu0 0
    %332 = vmatprep.subr.bf16.mxu0 0
    %333 = vmatpush1.bf16.msra.mxu0 0
    %334 = vmatprep.subr.bf16.mxu0 0
    %335 = vmatpush1.bf16.msra.mxu0 0
    %336 = vmatprep.subr.bf16.mxu0 0
    %337 = vmatpush1.bf16.msra.mxu0 0
    %338 = vmatprep.mubr.bf16.mxu0 0
    %339 = vmatmul.mubr.bf16.gmra.mrb[0].mxu0 %v87
    %v340 = vpop.f32.mrb[0].mxu0
    %v341 = vadd.f32 %v133, %v340
    %v342 = vpop.f32.mrb[0].mxu0
    %v343 = vpop.f32.mrb[0].mxu0
    %v344 = vpop.f32.mrb[0].mxu0
    %345 = vdwg.mxu0
    %346 = vst [vmem:[#allocation2] sm:$0xff] %v300
    %347 = vst [vmem:[#allocation2 + $0x8] sm:$0xff] %v302
    %348 = vst [vmem:[#allocation2 + $0x10] sm:$0xff] %v341
    %v349 = vld [vmem:[%s1] sm:$0x1]
    %v350 = vld [vmem:[#allocation2] ss:$8 sm:$0x7]
    %v351 = vpack.c.bf16 %v349, %v349
    %v352 = vld [vmem:[#allocation9] sm:$0xff]
    %v353 = vld [vmem:[#allocation9 + $0x8] sm:$0xf]
    %v354 = vld [vmem:[#allocation9 + $0xc] sm:$0xff]
    %v355 = vld [vmem:[#allocation9 + $0x14] sm:$0xf]
    %v356 = vld [vmem:[#allocation9 + $0x18] sm:$0xff]
    %v357 = vld [vmem:[#allocation9 + $0x20] sm:$0xf]
    %v358 = vld [vmem:[#allocation9 + $0x24] sm:$0xff]
    %v359 = vld [vmem:[#allocation9 + $0x2c] sm:$0xf]
    %v360 = vld [vmem:[#allocation9 + $0x30] sm:$0xff]
    %v361 = vld [vmem:[#allocation9 + $0x38] sm:$0xf]
    %v362 = vld [vmem:[#allocation9 + $0x3c] sm:$0xff]
    %v363 = vld [vmem:[#allocation9 + $0x44] sm:$0xf]
    %v364 = vld [vmem:[#allocation9 + $0x48] sm:$0xff]
    %v365 = vld [vmem:[#allocation9 + $0x50] sm:$0xf]
    %v366 = vld [vmem:[#allocation9 + $0x54] sm:$0xff]
    %v367 = vld [vmem:[#allocation9 + $0x5c] sm:$0xf]
    %v368 = vld [vmem:[#allocation9 + $0x60] sm:$0xff]
    %v369 = vld [vmem:[#allocation9 + $0x68] sm:$0xf]
    %v370 = vld [vmem:[#allocation9 + $0x6c] sm:$0xff]
    %v371 = vld [vmem:[#allocation9 + $0x74] sm:$0xf]
    %v372 = vld [vmem:[#allocation9 + $0x78] sm:$0xff]
    %v373 = vld [vmem:[#allocation9 + $0x80] sm:$0xf]
    %v374 = vld [vmem:[#allocation9 + $0x84] sm:$0xff]
    %v375 = vld [vmem:[#allocation9 + $0x8c] sm:$0xf]
    %v376 = vld [vmem:[#allocation9 + $0x90] sm:$0xff]
    %v377 = vld [vmem:[#allocation9 + $0x98] sm:$0xf]
    %v378 = vld [vmem:[#allocation9 + $0x9c] sm:$0xff]
    %v379 = vld [vmem:[#allocation9 + $0xa4] sm:$0xf]
    %v380 = vld [vmem:[#allocation9 + $0xa8] sm:$0xff]
    %v381 = vld [vmem:[#allocation9 + $0xb0] sm:$0xf]
    %v382 = vld [vmem:[#allocation9 + $0xb4] sm:$0xff]
    %v383 = vld [vmem:[#allocation9 + $0xbc] sm:$0xf]
    %v416 = vunpack.c.l.b16 %v352
    %v417 = vunpack.c.h.b16 %v352
    %v418 = vunpack.c.l.b16 %v353
    %v419 = vunpack.c.l.b16 %v354
    %v420 = vunpack.c.h.b16 %v354
    %v421 = vunpack.c.l.b16 %v355
    %v422 = vunpack.c.l.b16 %v356
    %v423 = vunpack.c.h.b16 %v356
    %v424 = vunpack.c.l.b16 %v357
    %v425 = vunpack.c.l.b16 %v358
    %v426 = vunpack.c.h.b16 %v358
    %v427 = vunpack.c.l.b16 %v359
    %v428 = vunpack.c.l.b16 %v360
    %v429 = vunpack.c.h.b16 %v360
    %v430 = vunpack.c.l.b16 %v361
    %v431 = vunpack.c.l.b16 %v362
    %v432 = vunpack.c.h.b16 %v362
    %v433 = vunpack.c.l.b16 %v363
    %v434 = vunpack.c.l.b16 %v364
    %v435 = vunpack.c.h.b16 %v364
    %v436 = vunpack.c.l.b16 %v365
    %v437 = vunpack.c.l.b16 %v366
    %v438 = vunpack.c.h.b16 %v366
    %v439 = vunpack.c.l.b16 %v367
    %v440 = vunpack.c.l.b16 %v368
    %v441 = vunpack.c.h.b16 %v368
    %v442 = vunpack.c.l.b16 %v369
    %v443 = vunpack.c.l.b16 %v370
    %v444 = vunpack.c.h.b16 %v370
    %v445 = vunpack.c.l.b16 %v371
    %v446 = vunpack.c.l.b16 %v372
    %v447 = vunpack.c.h.b16 %v372
    %v448 = vunpack.c.l.b16 %v373
    %v449 = vunpack.c.l.b16 %v374
    %v450 = vunpack.c.h.b16 %v374
    %v451 = vunpack.c.l.b16 %v375
    %v452 = vunpack.c.l.b16 %v376
    %v453 = vunpack.c.h.b16 %v376
    %v454 = vunpack.c.l.b16 %v377
    %v455 = vunpack.c.l.b16 %v378
    %v456 = vunpack.c.h.b16 %v378
    %v457 = vunpack.c.l.b16 %v379
    %v458 = vunpack.c.l.b16 %v380
    %v459 = vunpack.c.h.b16 %v380
    %v460 = vunpack.c.l.b16 %v381
    %v461 = vunpack.c.l.b16 %v382
    %v462 = vunpack.c.h.b16 %v382
    %v463 = vunpack.c.l.b16 %v383
    %v464 = vpack.c.b16 %v419, %v416
    %v465 = vpack.c.b16 %v420, %v417
    %v466 = vpack.c.b16 %v421, %v418
    %v467 = vpack.c.b16 %v425, %v422
    %v468 = vpack.c.b16 %v426, %v423
    %v469 = vpack.c.b16 %v427, %v424
    %v470 = vpack.c.b16 %v431, %v428
    %v471 = vpack.c.b16 %v432, %v429
    %v472 = vpack.c.b16 %v433, %v430
    %v473 = vpack.c.b16 %v437, %v434
    %v474 = vpack.c.b16 %v438, %v435
    %v475 = vpack.c.b16 %v439, %v436
    %v476 = vpack.c.b16 %v443, %v440
    %v477 = vpack.c.b16 %v444, %v441
    %v478 = vpack.c.b16 %v445, %v442
    %v479 = vpack.c.b16 %v449, %v446
    %v480 = vpack.c.b16 %v450, %v447
    %v481 = vpack.c.b16 %v451, %v448
    %v482 = vpack.c.b16 %v455, %v452
    %v483 = vpack.c.b16 %v456, %v453
    %v484 = vpack.c.b16 %v457, %v454
    %v485 = vpack.c.b16 %v461, %v458
    %v486 = vpack.c.b16 %v462, %v459
    %v487 = vpack.c.b16 %v463, %v460
    %512 = vmatprep.subr.bf16.mxu0 %v465
    %513 = vmatpush1.bf16.msra.mxu0 %v464
    %514 = vmatprep.subr.bf16.mxu0 %v468
    %515 = vmatpush1.bf16.msra.mxu0 %v467
    %516 = vmatprep.subr.bf16.mxu0 %v471
    %517 = vmatpush1.bf16.msra.mxu0 %v470
    %518 = vmatprep.subr.bf16.mxu0 %v474
    %519 = vmatpush1.bf16.msra.mxu0 %v473
    %520 = vmatprep.subr.bf16.mxu0 %v477
    %521 = vmatpush1.bf16.msra.mxu0 %v476
    %522 = vmatprep.subr.bf16.mxu0 %v480
    %523 = vmatpush1.bf16.msra.mxu0 %v479
    %524 = vmatprep.subr.bf16.mxu0 %v483
    %525 = vmatpush1.bf16.msra.mxu0 %v482
    %526 = vmatprep.subr.bf16.mxu0 %v486
    %527 = vmatpush1.bf16.msra.mxu0 %v485
    %528 = vmatprep.subr.bf16.mxu0 0
    %529 = vmatpush1.bf16.msra.mxu0 0
    %530 = vmatprep.subr.bf16.mxu0 0
    %531 = vmatpush1.bf16.msra.mxu0 0
    %532 = vmatprep.subr.bf16.mxu0 0
    %533 = vmatpush1.bf16.msra.mxu0 0
    %534 = vmatprep.subr.bf16.mxu0 0
    %535 = vmatpush1.bf16.msra.mxu0 0
    %536 = vmatprep.subr.bf16.mxu0 0
    %537 = vmatpush1.bf16.msra.mxu0 0
    %538 = vmatprep.subr.bf16.mxu0 0
    %539 = vmatpush1.bf16.msra.mxu0 0
    %540 = vmatprep.subr.bf16.mxu0 0
    %541 = vmatpush1.bf16.msra.mxu0 0
    %542 = vmatprep.subr.bf16.mxu0 0
    %543 = vmatpush1.bf16.msra.mxu0 0
    %544 = vmatprep.mubr.bf16.mxu0 0
    %545 = vmatmul.mubr.bf16.gmra.mrb[0].mxu0 %v351
    %v546 = vpop.f32.mrb[0].mxu0
    %v547 = vadd.f32 0.0, %v546
    %v548 = vpop.f32.mrb[0].mxu0
    %v549 = vadd.f32 0.0, %v548
    %v550 = vpop.f32.mrb[0].mxu0
    %v551 = vpop.f32.mrb[0].mxu0
    %552 = vdwg.mxu0
    %553 = vmatprep.subr.bf16.mxu0 0
    %554 = vmatpush1.bf16.msra.mxu0 %v466
    %555 = vmatprep.subr.bf16.mxu0 0
    %556 = vmatpush1.bf16.msra.mxu0 %v469
    %557 = vmatprep.subr.bf16.mxu0 0
    %558 = vmatpush1.bf16.msra.mxu0 %v472
    %559 = vmatprep.subr.bf16.mxu0 0
    %560 = vmatpush1.bf16.msra.mxu0 %v475
    %561 = vmatprep.subr.bf16.mxu0 0
    %562 = vmatpush1.bf16.msra.mxu0 %v478
    %563 = vmatprep.subr.bf16.mxu0 0
    %564 = vmatpush1.bf16.msra.mxu0 %v481
    %565 = vmatprep.subr.bf16.mxu0 0
    %566 = vmatpush1.bf16.msra.mxu0 %v484
    %567 = vmatprep.subr.bf16.mxu0 0
    %568 = vmatpush1.bf16.msra.mxu0 %v487
    %569 = vmatprep.subr.bf16.mxu0 0
    %570 = vmatpush1.bf16.msra.mxu0 0
    %571 = vmatprep.subr.bf16.mxu0 0
    %572 = vmatpush1.bf16.msra.mxu0 0
    %573 = vmatprep.subr.bf16.mxu0 0
    %574 = vmatpush1.bf16.msra.mxu0 0
    %575 = vmatprep.subr.bf16.mxu0 0
    %576 = vmatpush1.bf16.msra.mxu0 0
    %577 = vmatprep.subr.bf16.mxu0 0
    %578 = vmatpush1.bf16.msra.mxu0 0
    %579 = vmatprep.subr.bf16.mxu0 0
    %580 = vmatpush1.bf16.msra.mxu0 0
    %581 = vmatprep.subr.bf16.mxu0 0
    %582 = vmatpush1.bf16.msra.mxu0 0
    %583 = vmatprep.subr.bf16.mxu0 0
    %584 = vmatpush1.bf16.msra.mxu0 0
    %585 = vmatprep.mubr.bf16.mxu0 0
    %586 = vmatmul.mubr.bf16.gmra.mrb[0].mxu0 %v351
    %v587 = vpop.f32.mrb[0].mxu0
    %v588 = vadd.f32 0.0, %v587
    %v589 = vpop.f32.mrb[0].mxu0
    %v590 = vpop.f32.mrb[0].mxu0
    %v591 = vpop.f32.mrb[0].mxu0
    %592 = vdwg.mxu0
    %v593 = vadd.f32 %v350, %v547
    %v594 = vxor.u32 %v593, 2147483648
    %v595 = vmul.f32 %v594, 1.442695
    %v596 = vpow.pop %v595
    %v597 = vadd.f32 %v596, 1.0
    %v598 = vrcp.pop %v597
    %v599 = vmul.f32 1.0, %v598
    %v601 = vrot.slane %v350, 1
    %v603 = vadd.f32 %v601, %v549
    %v604 = vxor.u32 %v603, 2147483648
    %v605 = vmul.f32 %v604, 1.442695
    %v606 = vpow.pop %v605
    %v607 = vadd.f32 %v606, 1.0
    %v608 = vrcp.pop %v607
    %v609 = vmul.f32 1.0, %v608
    %v610 = vld [vmem:[%s5] sm:$0x1]
    %v611 = vadd.f32 %v588, %v610
    %v612 = vmul.f32 %v599, %v611
    %v613 = vrot.slane %v350, 2
    %v615 = vadd.f32 %v613, %v612
    %v616 = vtanh.pop %v615
    %v617 = vsub.f32 1.0, %v609
    %v618 = vmul.f32 %v617, %v616
    %v619 = vmul.f32 %v609, %v349
    %v620 = vadd.f32 %v618, %v619
    %621 = vst [vmem:[#allocation3] sm:$0x1] %v620
    %s622 = scalar_lea.vmem [#allocation2], 1
    %v623 = vld [vmem:[%s622] ss:$8 sm:$0x7]
    %v624 = vpack.c.bf16 %v620, %v620
    %v625 = vld [vmem:[#allocation9] sm:$0xff]
    %v626 = vld [vmem:[#allocation9 + $0x8] sm:$0xf]
    %v627 = vld [vmem:[#allocation9 + $0xc] sm:$0xff]
    %v628 = vld [vmem:[#allocation9 + $0x14] sm:$0xf]
    %v629 = vld [vmem:[#allocation9 + $0x18] sm:$0xff]
    %v630 = vld [vmem:[#allocation9 + $0x20] sm:$0xf]
    %v631 = vld [vmem:[#allocation9 + $0x24] sm:$0xff]
    %v632 = vld [vmem:[#allocation9 + $0x2c] sm:$0xf]
    %v633 = vld [vmem:[#allocation9 + $0x30] sm:$0xff]
    %v634 = vld [vmem:[#allocation9 + $0x38] sm:$0xf]
    %v635 = vld [vmem:[#allocation9 + $0x3c] sm:$0xff]
    %v636 = vld [vmem:[#allocation9 + $0x44] sm:$0xf]
    %v637 = vld [vmem:[#allocation9 + $0x48] sm:$0xff]
    %v638 = vld [vmem:[#allocation9 + $0x50] sm:$0xf]
    %v639 = vld [vmem:[#allocation9 + $0x54] sm:$0xff]
    %v640 = vld [vmem:[#allocation9 + $0x5c] sm:$0xf]
    %v641 = vld [vmem:[#allocation9 + $0x60] sm:$0xff]
    %v642 = vld [vmem:[#allocation9 + $0x68] sm:$0xf]
    %v643 = vld [vmem:[#allocation9 + $0x6c] sm:$0xff]
    %v644 = vld [vmem:[#allocation9 + $0x74] sm:$0xf]
    %v645 = vld [vmem:[#allocation9 + $0x78] sm:$0xff]
    %v646 = vld [vmem:[#allocation9 + $0x80] sm:$0xf]
    %v647 = vld [vmem:[#allocation9 + $0x84] sm:$0xff]
    %v648 = vld [vmem:[#allocation9 + $0x8c] sm:$0xf]
    %v649 = vld [vmem:[#allocation9 + $0x90] sm:$0xff]
    %v650 = vld [vmem:[#allocation9 + $0x98] sm:$0xf]
    %v651 = vld [vmem:[#allocation9 + $0x9c] sm:$0xff]
    %v652 = vld [vmem:[#allocation9 + $0xa4] sm:$0xf]
    %v653 = vld [vmem:[#allocation9 + $0xa8] sm:$0xff]
    %v654 = vld [vmem:[#allocation9 + $0xb0] sm:$0xf]
    %v655 = vld [vmem:[#allocation9 + $0xb4] sm:$0xff]
    %v656 = vld [vmem:[#allocation9 + $0xbc] sm:$0xf]
    %v689 = vunpack.c.l.b16 %v625
    %v690 = vunpack.c.h.b16 %v625
    %v691 = vunpack.c.l.b16 %v626
    %v692 = vunpack.c.l.b16 %v627
    %v693 = vunpack.c.h.b16 %v627
    %v694 = vunpack.c.l.b16 %v628
    %v695 = vunpack.c.l.b16 %v629
    %v696 = vunpack.c.h.b16 %v629
    %v697 = vunpack.c.l.b16 %v630
    %v698 = vunpack.c.l.b16 %v631
    %v699 = vunpack.c.h.b16 %v631
    %v700 = vunpack.c.l.b16 %v632
    %v701 = vunpack.c.l.b16 %v633
    %v702 = vunpack.c.h.b16 %v633
    %v703 = vunpack.c.l.b16 %v634
    %v704 = vunpack.c.l.b16 %v635
    %v705 = vunpack.c.h.b16 %v635
    %v706 = vunpack.c.l.b16 %v636
    %v707 = vunpack.c.l.b16 %v637
    %v708 = vunpack.c.h.b16 %v637
    %v709 = vunpack.c.l.b16 %v638
    %v710 = vunpack.c.l.b16 %v639
    %v711 = vunpack.c.h.b16 %v639
    %v712 = vunpack.c.l.b16 %v640
    %v713 = vunpack.c.l.b16 %v641
    %v714 = vunpack.c.h.b16 %v641
    %v715 = vunpack.c.l.b16 %v642
    %v716 = vunpack.c.l.b16 %v643
    %v717 = vunpack.c.h.b16 %v643
    %v718 = vunpack.c.l.b16 %v644
    %v719 = vunpack.c.l.b16 %v645
    %v720 = vunpack.c.h.b16 %v645
    %v721 = vunpack.c.l.b16 %v646
    %v722 = vunpack.c.l.b16 %v647
    %v723 = vunpack.c.h.b16 %v647
    %v724 = vunpack.c.l.b16 %v648
    %v725 = vunpack.c.l.b16 %v649
    %v726 = vunpack.c.h.b16 %v649
    %v727 = vunpack.c.l.b16 %v650
    %v728 = vunpack.c.l.b16 %v651
    %v729 = vunpack.c.h.b16 %v651
    %v730 = vunpack.c.l.b16 %v652
    %v731 = vunpack.c.l.b16 %v653
    %v732 = vunpack.c.h.b16 %v653
    %v733 = vunpack.c.l.b16 %v654
    %v734 = vunpack.c.l.b16 %v655
    %v735 = vunpack.c.h.b16 %v655
    %v736 = vunpack.c.l.b16 %v656
    %v737 = vpack.c.b16 %v692, %v689
    %v738 = vpack.c.b16 %v693, %v690
    %v739 = vpack.c.b16 %v694, %v691
    %v740 = vpack.c.b16 %v698, %v695
    %v741 = vpack.c.b16 %v699, %v696
    %v742 = vpack.c.b16 %v700, %v697
    %v743 = vpack.c.b16 %v704, %v701
    %v744 = vpack.c.b16 %v705, %v702
    %v745 = vpack.c.b16 %v706, %v703
    %v746 = vpack.c.b16 %v710, %v707
    %v747 = vpack.c.b16 %v711, %v708
    %v748 = vpack.c.b16 %v712, %v709
    %v749 = vpack.c.b16 %v716, %v713
    %v750 = vpack.c.b16 %v717, %v714
    %v751 = vpack.c.b16 %v718, %v715
    %v752 = vpack.c.b16 %v722, %v719
    %v753 = vpack.c.b16 %v723, %v720
    %v754 = vpack.c.b16 %v724, %v721
    %v755 = vpack.c.b16 %v728, %v725
    %v756 = vpack.c.b16 %v729, %v726
    %v757 = vpack.c.b16 %v730, %v727
    %v758 = vpack.c.b16 %v734, %v731
    %v759 = vpack.c.b16 %v735, %v732
    %v760 = vpack.c.b16 %v736, %v733
    %785 = vmatprep.subr.bf16.mxu0 %v738
    %786 = vmatpush1.bf16.msra.mxu0 %v737
    %787 = vmatprep.subr.bf16.mxu0 %v741
    %788 = vmatpush1.bf16.msra.mxu0 %v740
    %789 = vmatprep.subr.bf16.mxu0 %v744
    %790 = vmatpush1.bf16.msra.mxu0 %v743
    %791 = vmatprep.subr.bf16.mxu0 %v747
    %792 = vmatpush1.bf16.msra.mxu0 %v746
    %793 = vmatprep.subr.bf16.mxu0 %v750
    %794 = vmatpush1.bf16.msra.mxu0 %v749
    %795 = vmatprep.subr.bf16.mxu0 %v753
    %796 = vmatpush1.bf16.msra.mxu0 %v752
    %797 = vmatprep.subr.bf16.mxu0 %v756
    %798 = vmatpush1.bf16.msra.mxu0 %v755
    %799 = vmatprep.subr.bf16.mxu0 %v759
    %800 = vmatpush1.bf16.msra.mxu0 %v758
    %801 = vmatprep.subr.bf16.mxu0 0
    %802 = vmatpush1.bf16.msra.mxu0 0
    %803 = vmatprep.subr.bf16.mxu0 0
    %804 = vmatpush1.bf16.msra.mxu0 0
    %805 = vmatprep.subr.bf16.mxu0 0
    %806 = vmatpush1.bf16.msra.mxu0 0
    %807 = vmatprep.subr.bf16.mxu0 0
    %808 = vmatpush1.bf16.msra.mxu0 0
    %809 = vmatprep.subr.bf16.mxu0 0
    %810 = vmatpush1.bf16.msra.mxu0 0
    %811 = vmatprep.subr.bf16.mxu0 0
    %812 = vmatpush1.bf16.msra.mxu0 0
    %813 = vmatprep.subr.bf16.mxu0 0
    %814 = vmatpush1.bf16.msra.mxu0 0
    %815 = vmatprep.subr.bf16.mxu0 0
    %816 = vmatpush1.bf16.msra.mxu0 0
    %817 = vmatprep.mubr.bf16.mxu0 0
    %818 = vmatmul.mubr.bf16.gmra.mrb[0].mxu0 %v624
    %v819 = vpop.f32.mrb[0].mxu0
    %v820 = vadd.f32 0.0, %v819
    %v821 = vpop.f32.mrb[0].mxu0
    %v822 = vadd.f32 0.0, %v821
    %v823 = vpop.f32.mrb[0].mxu0
    %v824 = vpop.f32.mrb[0].mxu0
    %825 = vdwg.mxu0
    %826 = vmatprep.subr.bf16.mxu0 0
    %827 = vmatpush1.bf16.msra.mxu0 %v739
    %828 = vmatprep.subr.bf16.mxu0 0
    %829 = vmatpush1.bf16.msra.mxu0 %v742
    %830 = vmatprep.subr.bf16.mxu0 0
    %831 = vmatpush1.bf16.msra.mxu0 %v745
    %832 = vmatprep.subr.bf16.mxu0 0
    %833 = vmatpush1.bf16.msra.mxu0 %v748
    %834 = vmatprep.subr.bf16.mxu0 0
    %835 = vmatpush1.bf16.msra.mxu0 %v751
    %836 = vmatprep.subr.bf16.mxu0 0
    %837 = vmatpush1.bf16.msra.mxu0 %v754
    %838 = vmatprep.subr.bf16.mxu0 0
    %839 = vmatpush1.bf16.msra.mxu0 %v757
    %840 = vmatprep.subr.bf16.mxu0 0
    %841 = vmatpush1.bf16.msra.mxu0 %v760
    %842 = vmatprep.subr.bf16.mxu0 0
    %843 = vmatpush1.bf16.msra.mxu0 0
    %844 = vmatprep.subr.bf16.mxu0 0
    %845 = vmatpush1.bf16.msra.mxu0 0
    %846 = vmatprep.subr.bf16.mxu0 0
    %847 = vmatpush1.bf16.msra.mxu0 0
    %848 = vmatprep.subr.bf16.mxu0 0
    %849 = vmatpush1.bf16.msra.mxu0 0
    %850 = vmatprep.subr.bf16.mxu0 0
    %851 = vmatpush1.bf16.msra.mxu0 0
    %852 = vmatprep.subr.bf16.mxu0 0
    %853 = vmatpush1.bf16.msra.mxu0 0
    %854 = vmatprep.subr.bf16.mxu0 0
    %855 = vmatpush1.bf16.msra.mxu0 0
    %856 = vmatprep.subr.bf16.mxu0 0
    %857 = vmatpush1.bf16.msra.mxu0 0
    %858 = vmatprep.mubr.bf16.mxu0 0
    %859 = vmatmul.mubr.bf16.gmra.mrb[0].mxu0 %v624
    %v860 = vpop.f32.mrb[0].mxu0
    %v861 = vadd.f32 0.0, %v860
    %v862 = vpop.f32.mrb[0].mxu0
    %v863 = vpop.f32.mrb[0].mxu0
    %v864 = vpop.f32.mrb[0].mxu0
    %865 = vdwg.mxu0
    %v866 = vadd.f32 %v623, %v820
    %v867 = vxor.u32 %v866, 2147483648
    %v868 = vmul.f32 %v867, 1.442695
    %v869 = vpow.pop %v868
    %v870 = vadd.f32 %v869, 1.0
    %v871 = vrcp.pop %v870
    %v872 = vmul.f32 1.0, %v871
    %v874 = vrot.slane %v623, 1
    %v876 = vadd.f32 %v874, %v822
    %v877 = vxor.u32 %v876, 2147483648
    %v878 = vmul.f32 %v877, 1.442695
    %v879 = vpow.pop %v878
    %v880 = vadd.f32 %v879, 1.0
    %v881 = vrcp.pop %v880
    %v882 = vmul.f32 1.0, %v881
    %v883 = vld [vmem:[%s5] sm:$0x1]
    %v884 = vadd.f32 %v861, %v883
    %v885 = vmul.f32 %v872, %v884
    %v886 = vrot.slane %v623, 2
    %v888 = vadd.f32 %v886, %v885
    %v889 = vtanh.pop %v888
    %v890 = vsub.f32 1.0, %v882
    %v891 = vmul.f32 %v890, %v889
    %v892 = vmul.f32 %v882, %v620
    %v893 = vadd.f32 %v891, %v892
    %894 = vst [vmem:[#allocation3 + $0x1] sm:$0x1] %v893
    %s895 = scalar_lea.vmem [#allocation2], 2
    %v896 = vld [vmem:[%s895] ss:$8 sm:$0x7]
    %v897 = vpack.c.bf16 %v893, %v893
    %v898 = vld [vmem:[#allocation9] sm:$0xff]
    %v899 = vld [vmem:[#allocation9 + $0x8] sm:$0xf]
    %v900 = vld [vmem:[#allocation9 + $0xc] sm:$0xff]
    %v901 = vld [vmem:[#allocation9 + $0x14] sm:$0xf]
    %v902 = vld [vmem:[#allocation9 + $0x18] sm:$0xff]
    %v903 = vld [vmem:[#allocation9 + $0x20] sm:$0xf]
    %v904 = vld [vmem:[#allocation9 + $0x24] sm:$0xff]
    %v905 = vld [vmem:[#allocation9 + $0x2c] sm:$0xf]
    %v906 = vld [vmem:[#allocation9 + $0x30] sm:$0xff]
    %v907 = vld [vmem:[#allocation9 + $0x38] sm:$0xf]
    %v908 = vld [vmem:[#allocation9 + $0x3c] sm:$0xff]
    %v909 = vld [vmem:[#allocation9 + $0x44] sm:$0xf]
    %v910 = vld [vmem:[#allocation9 + $0x48] sm:$0xff]
    %v911 = vld [vmem:[#allocation9 + $0x50] sm:$0xf]
    %v912 = vld [vmem:[#allocation9 + $0x54] sm:$0xff]
    %v913 = vld [vmem:[#allocation9 + $0x5c] sm:$0xf]
    %v914 = vld [vmem:[#allocation9 + $0x60] sm:$0xff]
    %v915 = vld [vmem:[#allocation9 + $0x68] sm:$0xf]
    %v916 = vld [vmem:[#allocation9 + $0x6c] sm:$0xff]
    %v917 = vld [vmem:[#allocation9 + $0x74] sm:$0xf]
    %v918 = vld [vmem:[#allocation9 + $0x78] sm:$0xff]
    %v919 = vld [vmem:[#allocation9 + $0x80] sm:$0xf]
    %v920 = vld [vmem:[#allocation9 + $0x84] sm:$0xff]
    %v921 = vld [vmem:[#allocation9 + $0x8c] sm:$0xf]
    %v922 = vld [vmem:[#allocation9 + $0x90] sm:$0xff]
    %v923 = vld [vmem:[#allocation9 + $0x98] sm:$0xf]
    %v924 = vld [vmem:[#allocation9 + $0x9c] sm:$0xff]
    %v925 = vld [vmem:[#allocation9 + $0xa4] sm:$0xf]
    %v926 = vld [vmem:[#allocation9 + $0xa8] sm:$0xff]
    %v927 = vld [vmem:[#allocation9 + $0xb0] sm:$0xf]
    %v928 = vld [vmem:[#allocation9 + $0xb4] sm:$0xff]
    %v929 = vld [vmem:[#allocation9 + $0xbc] sm:$0xf]
    %v962 = vunpack.c.l.b16 %v898
    %v963 = vunpack.c.h.b16 %v898
    %v964 = vunpack.c.l.b16 %v899
    %v965 = vunpack.c.l.b16 %v900
    %v966 = vunpack.c.h.b16 %v900
    %v967 = vunpack.c.l.b16 %v901
    %v968 = vunpack.c.l.b16 %v902
    %v969 = vunpack.c.h.b16 %v902
    %v970 = vunpack.c.l.b16 %v903
    %v971 = vunpack.c.l.b16 %v904
    %v972 = vunpack.c.h.b16 %v904
    %v973 = vunpack.c.l.b16 %v905
    %v974 = vunpack.c.l.b16 %v906
    %v975 = vunpack.c.h.b16 %v906
    %v976 = vunpack.c.l.b16 %v907
    %v977 = vunpack.c.l.b16 %v908
    %v978 = vunpack.c.h.b16 %v908
    %v979 = vunpack.c.l.b16 %v909
    %v980 = vunpack.c.l.b16 %v910
    %v981 = vunpack.c.h.b16 %v910
    %v982 = vunpack.c.l.b16 %v911
    %v983 = vunpack.c.l.b16 %v912
    %v984 = vunpack.c.h.b16 %v912
    %v985 = vunpack.c.l.b16 %v913
    %v986 = vunpack.c.l.b16 %v914
    %v987 = vunpack.c.h.b16 %v914
    %v988 = vunpack.c.l.b16 %v915
    %v989 = vunpack.c.l.b16 %v916
    %v990 = vunpack.c.h.b16 %v916
    %v991 = vunpack.c.l.b16 %v917
    %v992 = vunpack.c.l.b16 %v918
    %v993 = vunpack.c.h.b16 %v918
    %v994 = vunpack.c.l.b16 %v919
    %v995 = vunpack.c.l.b16 %v920
    %v996 = vunpack.c.h.b16 %v920
    %v997 = vunpack.c.l.b16 %v921
    %v998 = vunpack.c.l.b16 %v922
    %v999 = vunpack.c.h.b16 %v922
    %v1000 = vunpack.c.l.b16 %v923
    %v1001 = vunpack.c.l.b16 %v924
    %v1002 = vunpack.c.h.b16 %v924
    %v1003 = vunpack.c.l.b16 %v925
    %v1004 = vunpack.c.l.b16 %v926
    %v1005 = vunpack.c.h.b16 %v926
    %v1006 = vunpack.c.l.b16 %v927
    %v1007 = vunpack.c.l.b16 %v928
    %v1008 = vunpack.c.h.b16 %v928
    %v1009 = vunpack.c.l.b16 %v929
    %v1010 = vpack.c.b16 %v965, %v962
    %v1011 = vpack.c.b16 %v966, %v963
    %v1012 = vpack.c.b16 %v967, %v964
    %v1013 = vpack.c.b16 %v971, %v968
    %v1014 = vpack.c.b16 %v972, %v969
    %v1015 = vpack.c.b16 %v973, %v970
    %v1016 = vpack.c.b16 %v977, %v974
    %v1017 = vpack.c.b16 %v978, %v975
    %v1018 = vpack.c.b16 %v979, %v976
    %v1019 = vpack.c.b16 %v983, %v980
    %v1020 = vpack.c.b16 %v984, %v981
    %v1021 = vpack.c.b16 %v985, %v982
    %v1022 = vpack.c.b16 %v989, %v986
    %v1023 = vpack.c.b16 %v990, %v987
    %v1024 = vpack.c.b16 %v991, %v988
    %v1025 = vpack.c.b16 %v995, %v992
    %v1026 = vpack.c.b16 %v996, %v993
    %v1027 = vpack.c.b16 %v997, %v994
    %v1028 = vpack.c.b16 %v1001, %v998
    %v1029 = vpack.c.b16 %v1002, %v999
    %v1030 = vpack.c.b16 %v1003, %v1000
    %v1031 = vpack.c.b16 %v1007, %v1004
    %v1032 = vpack.c.b16 %v1008, %v1005
    %v1033 = vpack.c.b16 %v1009, %v1006
    %1058 = vmatprep.subr.bf16.mxu0 %v1011
    %1059 = vmatpush1.bf16.msra.mxu0 %v1010
    %1060 = vmatprep.subr.bf16.mxu0 %v1014
    %1061 = vmatpush1.bf16.msra.mxu0 %v1013
    %1062 = vmatprep.subr.bf16.mxu0 %v1017
    %1063 = vmatpush1.bf16.msra.mxu0 %v1016
    %1064 = vmatprep.subr.bf16.mxu0 %v1020
    %1065 = vmatpush1.bf16.msra.mxu0 %v1019
    %1066 = vmatprep.subr.bf16.mxu0 %v1023
    %1067 = vmatpush1.bf16.msra.mxu0 %v1022
    %1068 = vmatprep.subr.bf16.mxu0 %v1026
    %1069 = vmatpush1.bf16.msra.mxu0 %v1025
    %1070 = vmatprep.subr.bf16.mxu0 %v1029
    %1071 = vmatpush1.bf16.msra.mxu0 %v1028
    %1072 = vmatprep.subr.bf16.mxu0 %v1032
    %1073 = vmatpush1.bf16.msra.mxu0 %v1031
    %1074 = vmatprep.subr.bf16.mxu0 0
    %1075 = vmatpush1.bf16.msra.mxu0 0
    %1076 = vmatprep.subr.bf16.mxu0 0
    %1077 = vmatpush1.bf16.msra.mxu0 0
    %1078 = vmatprep.subr.bf16.mxu0 0
    %1079 = vmatpush1.bf16.msra.mxu0 0
    %1080 = vmatprep.subr.bf16.mxu0 0
    %1081 = vmatpush1.bf16.msra.mxu0 0
    %1082 = vmatprep.subr.bf16.mxu0 0
    %1083 = vmatpush1.bf16.msra.mxu0 0
    %1084 = vmatprep.subr.bf16.mxu0 0
    %1085 = vmatpush1.bf16.msra.mxu0 0
    %1086 = vmatprep.subr.bf16.mxu0 0
    %1087 = vmatpush1.bf16.msra.mxu0 0
    %1088 = vmatprep.subr.bf16.mxu0 0
    %1089 = vmatpush1.bf16.msra.mxu0 0
    %1090 = vmatprep.mubr.bf16.mxu0 0
    %1091 = vmatmul.mubr.bf16.gmra.mrb[0].mxu0 %v897
    %v1092 = vpop.f32.mrb[0].mxu0
    %v1093 = vadd.f32 0.0, %v1092
    %v1094 = vpop.f32.mrb[0].mxu0
    %v1095 = vadd.f32 0.0, %v1094
    %v1096 = vpop.f32.mrb[0].mxu0
    %v1097 = vpop.f32.mrb[0].mxu0
    %1098 = vdwg.mxu0
    %1099 = vmatprep.subr.bf16.mxu0 0
    %1100 = vmatpush1.bf16.msra.mxu0 %v1012
    %1101 = vmatprep.subr.bf16.mxu0 0
    %1102 = vmatpush1.bf16.msra.mxu0 %v1015
    %1103 = vmatprep.subr.bf16.mxu0 0
    %1104 = vmatpush1.bf16.msra.mxu0 %v1018
    %1105 = vmatprep.subr.bf16.mxu0 0
    %1106 = vmatpush1.bf16.msra.mxu0 %v1021
    %1107 = vmatprep.subr.bf16.mxu0 0
    %1108 = vmatpush1.bf16.msra.mxu0 %v1024
    %1109 = vmatprep.subr.bf16.mxu0 0
    %1110 = vmatpush1.bf16.msra.mxu0 %v1027
    %1111 = vmatprep.subr.bf16.mxu0 0
    %1112 = vmatpush1.bf16.msra.mxu0 %v1030
    %1113 = vmatprep.subr.bf16.mxu0 0
    %1114 = vmatpush1.bf16.msra.mxu0 %v1033
    %1115 = vmatprep.subr.bf16.mxu0 0
    %1116 = vmatpush1.bf16.msra.mxu0 0
    %1117 = vmatprep.subr.bf16.mxu0 0
    %1118 = vmatpush1.bf16.msra.mxu0 0
    %1119 = vmatprep.subr.bf16.mxu0 0
    %1120 = vmatpush1.bf16.msra.mxu0 0
    %1121 = vmatprep.subr.bf16.mxu0 0
    %1122 = vmatpush1.bf16.msra.mxu0 0
    %1123 = vmatprep.subr.bf16.mxu0 0
    %1124 = vmatpush1.bf16.msra.mxu0 0
    %1125 = vmatprep.subr.bf16.mxu0 0
    %1126 = vmatpush1.bf16.msra.mxu0 0
    %1127 = vmatprep.subr.bf16.mxu0 0
    %1128 = vmatpush1.bf16.msra.mxu0 0
    %1129 = vmatprep.subr.bf16.mxu0 0
    %1130 = vmatpush1.bf16.msra.mxu0 0
    %1131 = vmatprep.mubr.bf16.mxu0 0
    %1132 = vmatmul.mubr.bf16.gmra.mrb[0].mxu0 %v897
    %v1133 = vpop.f32.mrb[0].mxu0
    %v1134 = vadd.f32 0.0, %v1133
    %v1135 = vpop.f32.mrb[0].mxu0
    %v1136 = vpop.f32.mrb[0].mxu0
    %v1137 = vpop.f32.mrb[0].mxu0
    %1138 = vdwg.mxu0
    %v1139 = vadd.f32 %v896, %v1093
    %v1140 = vxor.u32 %v1139, 2147483648
    %v1141 = vmul.f32 %v1140, 1.442695
    %v1142 = vpow.pop %v1141
    %v1143 = vadd.f32 %v1142, 1.0
    %v1144 = vrcp.pop %v1143
    %v1145 = vmul.f32 1.0, %v1144
    %v1147 = vrot.slane %v896, 1
    %v1149 = vadd.f32 %v1147, %v1095
    %v1150 = vxor.u32 %v1149, 2147483648
    %v1151 = vmul.f32 %v1150, 1.442695
    %v1152 = vpow.pop %v1151
    %v1153 = vadd.f32 %v1152, 1.0
    %v1154 = vrcp.pop %v1153
    %v1155 = vmul.f32 1.0, %v1154
    %v1156 = vld [vmem:[%s5] sm:$0x1]
    %v1157 = vadd.f32 %v1134, %v1156
    %v1158 = vmul.f32 %v1145, %v1157
    %v1159 = vrot.slane %v896, 2
    %v1161 = vadd.f32 %v1159, %v1158
    %v1162 = vtanh.pop %v1161
    %v1163 = vsub.f32 1.0, %v1155
    %v1164 = vmul.f32 %v1163, %v1162
    %v1165 = vmul.f32 %v1155, %v893
    %v1166 = vadd.f32 %v1164, %v1165
    %1167 = vst [vmem:[#allocation3 + $0x2] sm:$0x1] %v1166
    %s1168 = scalar_lea.vmem [#allocation2], 3
    %v1169 = vld [vmem:[%s1168] ss:$8 sm:$0x7]
    %v1170 = vpack.c.bf16 %v1166, %v1166
    %v1171 = vld [vmem:[#allocation9] sm:$0xff]
    %v1172 = vld [vmem:[#allocation9 + $0x8] sm:$0xf]
    %v1173 = vld [vmem:[#allocation9 + $0xc] sm:$0xff]
    %v1174 = vld [vmem:[#allocation9 + $0x14] sm:$0xf]
    %v1175 = vld [vmem:[#allocation9 + $0x18] sm:$0xff]
    %v1176 = vld [vmem:[#allocation9 + $0x20] sm:$0xf]
    %v1177 = vld [vmem:[#allocation9 + $0x24] sm:$0xff]
    %v1178 = vld [vmem:[#allocation9 + $0x2c] sm:$0xf]
    %v1179 = vld [vmem:[#allocation9 + $0x30] sm:$0xff]
    %v1180 = vld [vmem:[#allocation9 + $0x38] sm:$0xf]
    %v1181 = vld [vmem:[#allocation9 + $0x3c] sm:$0xff]
    %v1182 = vld [vmem:[#allocation9 + $0x44] sm:$0xf]
    %v1183 = vld [vmem:[#allocation9 + $0x48] sm:$0xff]
    %v1184 = vld [vmem:[#allocation9 + $0x50] sm:$0xf]
    %v1185 = vld [vmem:[#allocation9 + $0x54] sm:$0xff]
    %v1186 = vld [vmem:[#allocation9 + $0x5c] sm:$0xf]
    %v1187 = vld [vmem:[#allocation9 + $0x60] sm:$0xff]
    %v1188 = vld [vmem:[#allocation9 + $0x68] sm:$0xf]
    %v1189 = vld [vmem:[#allocation9 + $0x6c] sm:$0xff]
    %v1190 = vld [vmem:[#allocation9 + $0x74] sm:$0xf]
    %v1191 = vld [vmem:[#allocation9 + $0x78] sm:$0xff]
    %v1192 = vld [vmem:[#allocation9 + $0x80] sm:$0xf]
    %v1193 = vld [vmem:[#allocation9 + $0x84] sm:$0xff]
    %v1194 = vld [vmem:[#allocation9 + $0x8c] sm:$0xf]
    %v1195 = vld [vmem:[#allocation9 + $0x90] sm:$0xff]
    %v1196 = vld [vmem:[#allocation9 + $0x98] sm:$0xf]
    %v1197 = vld [vmem:[#allocation9 + $0x9c] sm:$0xff]
    %v1198 = vld [vmem:[#allocation9 + $0xa4] sm:$0xf]
    %v1199 = vld [vmem:[#allocation9 + $0xa8] sm:$0xff]
    %v1200 = vld [vmem:[#allocation9 + $0xb0] sm:$0xf]
    %v1201 = vld [vmem:[#allocation9 + $0xb4] sm:$0xff]
    %v1202 = vld [vmem:[#allocation9 + $0xbc] sm:$0xf]
    %v1235 = vunpack.c.l.b16 %v1171
    %v1236 = vunpack.c.h.b16 %v1171
    %v1237 = vunpack.c.l.b16 %v1172
    %v1238 = vunpack.c.l.b16 %v1173
    %v1239 = vunpack.c.h.b16 %v1173
    %v1240 = vunpack.c.l.b16 %v1174
    %v1241 = vunpack.c.l.b16 %v1175
    %v1242 = vunpack.c.h.b16 %v1175
    %v1243 = vunpack.c.l.b16 %v1176
    %v1244 = vunpack.c.l.b16 %v1177
    %v1245 = vunpack.c.h.b16 %v1177
    %v1246 = vunpack.c.l.b16 %v1178
    %v1247 = vunpack.c.l.b16 %v1179
    %v1248 = vunpack.c.h.b16 %v1179
    %v1249 = vunpack.c.l.b16 %v1180
    %v1250 = vunpack.c.l.b16 %v1181
    %v1251 = vunpack.c.h.b16 %v1181
    %v1252 = vunpack.c.l.b16 %v1182
    %v1253 = vunpack.c.l.b16 %v1183
    %v1254 = vunpack.c.h.b16 %v1183
    %v1255 = vunpack.c.l.b16 %v1184
    %v1256 = vunpack.c.l.b16 %v1185
    %v1257 = vunpack.c.h.b16 %v1185
    %v1258 = vunpack.c.l.b16 %v1186
    %v1259 = vunpack.c.l.b16 %v1187
    %v1260 = vunpack.c.h.b16 %v1187
    %v1261 = vunpack.c.l.b16 %v1188
    %v1262 = vunpack.c.l.b16 %v1189
    %v1263 = vunpack.c.h.b16 %v1189
    %v1264 = vunpack.c.l.b16 %v1190
    %v1265 = vunpack.c.l.b16 %v1191
    %v1266 = vunpack.c.h.b16 %v1191
    %v1267 = vunpack.c.l.b16 %v1192
    %v1268 = vunpack.c.l.b16 %v1193
    %v1269 = vunpack.c.h.b16 %v1193
    %v1270 = vunpack.c.l.b16 %v1194
    %v1271 = vunpack.c.l.b16 %v1195
    %v1272 = vunpack.c.h.b16 %v1195
    %v1273 = vunpack.c.l.b16 %v1196
    %v1274 = vunpack.c.l.b16 %v1197
    %v1275 = vunpack.c.h.b16 %v1197
    %v1276 = vunpack.c.l.b16 %v1198
    %v1277 = vunpack.c.l.b16 %v1199
    %v1278 = vunpack.c.h.b16 %v1199
    %v1279 = vunpack.c.l.b16 %v1200
    %v1280 = vunpack.c.l.b16 %v1201
    %v1281 = vunpack.c.h.b16 %v1201
    %v1282 = vunpack.c.l.b16 %v1202
    %v1283 = vpack.c.b16 %v1238, %v1235
    %v1284 = vpack.c.b16 %v1239, %v1236
    %v1285 = vpack.c.b16 %v1240, %v1237
    %v1286 = vpack.c.b16 %v1244, %v1241
    %v1287 = vpack.c.b16 %v1245, %v1242
    %v1288 = vpack.c.b16 %v1246, %v1243
    %v1289 = vpack.c.b16 %v1250, %v1247
    %v1290 = vpack.c.b16 %v1251, %v1248
    %v1291 = vpack.c.b16 %v1252, %v1249
    %v1292 = vpack.c.b16 %v1256, %v1253
    %v1293 = vpack.c.b16 %v1257, %v1254
    %v1294 = vpack.c.b16 %v1258, %v1255
    %v1295 = vpack.c.b16 %v1262, %v1259
    %v1296 = vpack.c.b16 %v1263, %v1260
    %v1297 = vpack.c.b16 %v1264, %v1261
    %v1298 = vpack.c.b16 %v1268, %v1265
    %v1299 = vpack.c.b16 %v1269, %v1266
    %v1300 = vpack.c.b16 %v1270, %v1267
    %v1301 = vpack.c.b16 %v1274, %v1271
    %v1302 = vpack.c.b16 %v1275, %v1272
    %v1303 = vpack.c.b16 %v1276, %v1273
    %v1304 = vpack.c.b16 %v1280, %v1277
    %v1305 = vpack.c.b16 %v1281, %v1278
    %v1306 = vpack.c.b16 %v1282, %v1279
    %1331 = vmatprep.subr.bf16.mxu0 %v1284
    %1332 = vmatpush1.bf16.msra.mxu0 %v1283
    %1333 = vmatprep.subr.bf16.mxu0 %v1287
    %1334 = vmatpush1.bf16.msra.mxu0 %v1286
    %1335 = vmatprep.subr.bf16.mxu0 %v1290
    %1336 = vmatpush1.bf16.msra.mxu0 %v1289
    %1337 = vmatprep.subr.bf16.mxu0 %v1293
    %1338 = vmatpush1.bf16.msra.mxu0 %v1292
    %1339 = vmatprep.subr.bf16.mxu0 %v1296
    %1340 = vmatpush1.bf16.msra.mxu0 %v1295
    %1341 = vmatprep.subr.bf16.mxu0 %v1299
    %1342 = vmatpush1.bf16.msra.mxu0 %v1298
    %1343 = vmatprep.subr.bf16.mxu0 %v1302
    %1344 = vmatpush1.bf16.msra.mxu0 %v1301
    %1345 = vmatprep.subr.bf16.mxu0 %v1305
    %1346 = vmatpush1.bf16.msra.mxu0 %v1304
    %1347 = vmatprep.subr.bf16.mxu0 0
    %1348 = vmatpush1.bf16.msra.mxu0 0
    %1349 = vmatprep.subr.bf16.mxu0 0
    %1350 = vmatpush1.bf16.msra.mxu0 0
    %1351 = vmatprep.subr.bf16.mxu0 0
    %1352 = vmatpush1.bf16.msra.mxu0 0
    %1353 = vmatprep.subr.bf16.mxu0 0
    %1354 = vmatpush1.bf16.msra.mxu0 0
    %1355 = vmatprep.subr.bf16.mxu0 0
    %1356 = vmatpush1.bf16.msra.mxu0 0
    %1357 = vmatprep.subr.bf16.mxu0 0
    %1358 = vmatpush1.bf16.msra.mxu0 0
    %1359 = vmatprep.subr.bf16.mxu0 0
    %1360 = vmatpush1.bf16.msra.mxu0 0
    %1361 = vmatprep.subr.bf16.mxu0 0
    %1362 = vmatpush1.bf16.msra.mxu0 0
    %1363 = vmatprep.mubr.bf16.mxu0 0
    %1364 = vmatmul.mubr.bf16.gmra.mrb[0].mxu0 %v1170
    %v1365 = vpop.f32.mrb[0].mxu0
    %v1366 = vadd.f32 0.0, %v1365
    %v1367 = vpop.f32.mrb[0].mxu0
    %v1368 = vadd.f32 0.0, %v1367
    %v1369 = vpop.f32.mrb[0].mxu0
    %v1370 = vpop.f32.mrb[0].mxu0
    %1371 = vdwg.mxu0
    %1372 = vmatprep.subr.bf16.mxu0 0
    %1373 = vmatpush1.bf16.msra.mxu0 %v1285
    %1374 = vmatprep.subr.bf16.mxu0 0
    %1375 = vmatpush1.bf16.msra.mxu0 %v1288
    %1376 = vmatprep.subr.bf16.mxu0 0
    %1377 = vmatpush1.bf16.msra.mxu0 %v1291
    %1378 = vmatprep.subr.bf16.mxu0 0
    %1379 = vmatpush1.bf16.msra.mxu0 %v1294
    %1380 = vmatprep.subr.bf16.mxu0 0
    %1381 = vmatpush1.bf16.msra.mxu0 %v1297
    %1382 = vmatprep.subr.bf16.mxu0 0
    %1383 = vmatpush1.bf16.msra.mxu0 %v1300
    %1384 = vmatprep.subr.bf16.mxu0 0
    %1385 = vmatpush1.bf16.msra.mxu0 %v1303
    %1386 = vmatprep.subr.bf16.mxu0 0
    %1387 = vmatpush1.bf16.msra.mxu0 %v1306
    %1388 = vmatprep.subr.bf16.mxu0 0
    %1389 = vmatpush1.bf16.msra.mxu0 0
    %1390 = vmatprep.subr.bf16.mxu0 0
    %1391 = vmatpush1.bf16.msra.mxu0 0
    %1392 = vmatprep.subr.bf16.mxu0 0
    %1393 = vmatpush1.bf16.msra.mxu0 0
    %1394 = vmatprep.subr.bf16.mxu0 0
    %1395 = vmatpush1.bf16.msra.mxu0 0
    %1396 = vmatprep.subr.bf16.mxu0 0
    %1397 = vmatpush1.bf16.msra.mxu0 0
    %1398 = vmatprep.subr.bf16.mxu0 0
    %1399 = vmatpush1.bf16.msra.mxu0 0
    %1400 = vmatprep.subr.bf16.mxu0 0
    %1401 = vmatpush1.bf16.msra.mxu0 0
    %1402 = vmatprep.subr.bf16.mxu0 0
    %1403 = vmatpush1.bf16.msra.mxu0 0
    %1404 = vmatprep.mubr.bf16.mxu0 0
    %1405 = vmatmul.mubr.bf16.gmra.mrb[0].mxu0 %v1170
    %v1406 = vpop.f32.mrb[0].mxu0
    %v1407 = vadd.f32 0.0, %v1406
    %v1408 = vpop.f32.mrb[0].mxu0
    %v1409 = vpop.f32.mrb[0].mxu0
    %v1410 = vpop.f32.mrb[0].mxu0
    %1411 = vdwg.mxu0
    %v1412 = vadd.f32 %v1169, %v1366
    %v1413 = vxor.u32 %v1412, 2147483648
    %v1414 = vmul.f32 %v1413, 1.442695
    %v1415 = vpow.pop %v1414
    %v1416 = vadd.f32 %v1415, 1.0
    %v1417 = vrcp.pop %v1416
    %v1418 = vmul.f32 1.0, %v1417
    %v1420 = vrot.slane %v1169, 1
    %v1422 = vadd.f32 %v1420, %v1368
    %v1423 = vxor.u32 %v1422, 2147483648
    %v1424 = vmul.f32 %v1423, 1.442695
    %v1425 = vpow.pop %v1424
    %v1426 = vadd.f32 %v1425, 1.0
    %v1427 = vrcp.pop %v1426
    %v1428 = vmul.f32 1.0, %v1427
    %v1429 = vld [vmem:[%s5] sm:$0x1]
    %v1430 = vadd.f32 %v1407, %v1429
    %v1431 = vmul.f32 %v1418, %v1430
    %v1432 = vrot.slane %v1169, 2
    %v1434 = vadd.f32 %v1432, %v1431
    %v1435 = vtanh.pop %v1434
    %v1436 = vsub.f32 1.0, %v1428
    %v1437 = vmul.f32 %v1436, %v1435
    %v1438 = vmul.f32 %v1428, %v1166
    %v1439 = vadd.f32 %v1437, %v1438
    %1440 = vst [vmem:[#allocation3 + $0x3] sm:$0x1] %v1439
    %s1441 = scalar_lea.vmem [#allocation2], 4
    %v1442 = vld [vmem:[%s1441] ss:$8 sm:$0x7]
    %v1443 = vpack.c.bf16 %v1439, %v1439
    %v1444 = vld [vmem:[#allocation9] sm:$0xff]
    %v1445 = vld [vmem:[#allocation9 + $0x8] sm:$0xf]
    %v1446 = vld [vmem:[#allocation9 + $0xc] sm:$0xff]
    %v1447 = vld [vmem:[#allocation9 + $0x14] sm:$0xf]
    %v1448 = vld [vmem:[#allocation9 + $0x18] sm:$0xff]
    %v1449 = vld [vmem:[#allocation9 + $0x20] sm:$0xf]
    %v1450 = vld [vmem:[#allocation9 + $0x24] sm:$0xff]
    %v1451 = vld [vmem:[#allocation9 + $0x2c] sm:$0xf]
    %v1452 = vld [vmem:[#allocation9 + $0x30] sm:$0xff]
    %v1453 = vld [vmem:[#allocation9 + $0x38] sm:$0xf]
    %v1454 = vld [vmem:[#allocation9 + $0x3c] sm:$0xff]
    %v1455 = vld [vmem:[#allocation9 + $0x44] sm:$0xf]
    %v1456 = vld [vmem:[#allocation9 + $0x48] sm:$0xff]
    %v1457 = vld [vmem:[#allocation9 + $0x50] sm:$0xf]
    %v1458 = vld [vmem:[#allocation9 + $0x54] sm:$0xff]
    %v1459 = vld [vmem:[#allocation9 + $0x5c] sm:$0xf]
    %v1460 = vld [vmem:[#allocation9 + $0x60] sm:$0xff]
    %v1461 = vld [vmem:[#allocation9 + $0x68] sm:$0xf]
    %v1462 = vld [vmem:[#allocation9 + $0x6c] sm:$0xff]
    %v1463 = vld [vmem:[#allocation9 + $0x74] sm:$0xf]
    %v1464 = vld [vmem:[#allocation9 + $0x78] sm:$0xff]
    %v1465 = vld [vmem:[#allocation9 + $0x80] sm:$0xf]
    %v1466 = vld [vmem:[#allocation9 + $0x84] sm:$0xff]
    %v1467 = vld [vmem:[#allocation9 + $0x8c] sm:$0xf]
    %v1468 = vld [vmem:[#allocation9 + $0x90] sm:$0xff]
    %v1469 = vld [vmem:[#allocation9 + $0x98] sm:$0xf]
    %v1470 = vld [vmem:[#allocation9 + $0x9c] sm:$0xff]
    %v1471 = vld [vmem:[#allocation9 + $0xa4] sm:$0xf]
    %v1472 = vld [vmem:[#allocation9 + $0xa8] sm:$0xff]
    %v1473 = vld [vmem:[#allocation9 + $0xb0] sm:$0xf]
    %v1474 = vld [vmem:[#allocation9 + $0xb4] sm:$0xff]
    %v1475 = vld [vmem:[#allocation9 + $0xbc] sm:$0xf]
    %v1508 = vunpack.c.l.b16 %v1444
    %v1509 = vunpack.c.h.b16 %v1444
    %v1510 = vunpack.c.l.b16 %v1445
    %v1511 = vunpack.c.l.b16 %v1446
    %v1512 = vunpack.c.h.b16 %v1446
    %v1513 = vunpack.c.l.b16 %v1447
    %v1514 = vunpack.c.l.b16 %v1448
    %v1515 = vunpack.c.h.b16 %v1448
    %v1516 = vunpack.c.l.b16 %v1449
    %v1517 = vunpack.c.l.b16 %v1450
    %v1518 = vunpack.c.h.b16 %v1450
    %v1519 = vunpack.c.l.b16 %v1451
    %v1520 = vunpack.c.l.b16 %v1452
    %v1521 = vunpack.c.h.b16 %v1452
    %v1522 = vunpack.c.l.b16 %v1453
    %v1523 = vunpack.c.l.b16 %v1454
    %v1524 = vunpack.c.h.b16 %v1454
    %v1525 = vunpack.c.l.b16 %v1455
    %v1526 = vunpack.c.l.b16 %v1456
    %v1527 = vunpack.c.h.b16 %v1456
    %v1528 = vunpack.c.l.b16 %v1457
    %v1529 = vunpack.c.l.b16 %v1458
    %v1530 = vunpack.c.h.b16 %v1458
    %v1531 = vunpack.c.l.b16 %v1459
    %v1532 = vunpack.c.l.b16 %v1460
    %v1533 = vunpack.c.h.b16 %v1460
    %v1534 = vunpack.c.l.b16 %v1461
    %v1535 = vunpack.c.l.b16 %v1462
    %v1536 = vunpack.c.h.b16 %v1462
    %v1537 = vunpack.c.l.b16 %v1463
    %v1538 = vunpack.c.l.b16 %v1464
    %v1539 = vunpack.c.h.b16 %v1464
    %v1540 = vunpack.c.l.b16 %v1465
    %v1541 = vunpack.c.l.b16 %v1466
    %v1542 = vunpack.c.h.b16 %v1466
    %v1543 = vunpack.c.l.b16 %v1467
    %v1544 = vunpack.c.l.b16 %v1468
    %v1545 = vunpack.c.h.b16 %v1468
    %v1546 = vunpack.c.l.b16 %v1469
    %v1547 = vunpack.c.l.b16 %v1470
    %v1548 = vunpack.c.h.b16 %v1470
    %v1549 = vunpack.c.l.b16 %v1471
    %v1550 = vunpack.c.l.b16 %v1472
    %v1551 = vunpack.c.h.b16 %v1472
    %v1552 = vunpack.c.l.b16 %v1473
    %v1553 = vunpack.c.l.b16 %v1474
    %v1554 = vunpack.c.h.b16 %v1474
    %v1555 = vunpack.c.l.b16 %v1475
    %v1556 = vpack.c.b16 %v1511, %v1508
    %v1557 = vpack.c.b16 %v1512, %v1509
    %v1558 = vpack.c.b16 %v1513, %v1510
    %v1559 = vpack.c.b16 %v1517, %v1514
    %v1560 = vpack.c.b16 %v1518, %v1515
    %v1561 = vpack.c.b16 %v1519, %v1516
    %v1562 = vpack.c.b16 %v1523, %v1520
    %v1563 = vpack.c.b16 %v1524, %v1521
    %v1564 = vpack.c.b16 %v1525, %v1522
    %v1565 = vpack.c.b16 %v1529, %v1526
    %v1566 = vpack.c.b16 %v1530, %v1527
    %v1567 = vpack.c.b16 %v1531, %v1528
    %v1568 = vpack.c.b16 %v1535, %v1532
    %v1569 = vpack.c.b16 %v1536, %v1533
    %v1570 = vpack.c.b16 %v1537, %v1534
    %v1571 = vpack.c.b16 %v1541, %v1538
    %v1572 = vpack.c.b16 %v1542, %v1539
    %v1573 = vpack.c.b16 %v1543, %v1540
    %v1574 = vpack.c.b16 %v1547, %v1544
    %v1575 = vpack.c.b16 %v1548, %v1545
    %v1576 = vpack.c.b16 %v1549, %v1546
    %v1577 = vpack.c.b16 %v1553, %v1550
    %v1578 = vpack.c.b16 %v1554, %v1551
    %v1579 = vpack.c.b16 %v1555, %v1552
    %1604 = vmatprep.subr.bf16.mxu0 %v1557
    %1605 = vmatpush1.bf16.msra.mxu0 %v1556
    %1606 = vmatprep.subr.bf16.mxu0 %v1560
    %1607 = vmatpush1.bf16.msra.mxu0 %v1559
    %1608 = vmatprep.subr.bf16.mxu0 %v1563
    %1609 = vmatpush1.bf16.msra.mxu0 %v1562
    %1610 = vmatprep.subr.bf16.mxu0 %v1566
    %1611 = vmatpush1.bf16.msra.mxu0 %v1565
    %1612 = vmatprep.subr.bf16.mxu0 %v1569
    %1613 = vmatpush1.bf16.msra.mxu0 %v1568
    %1614 = vmatprep.subr.bf16.mxu0 %v1572
    %1615 = vmatpush1.bf16.msra.mxu0 %v1571
    %1616 = vmatprep.subr.bf16.mxu0 %v1575
    %1617 = vmatpush1.bf16.msra.mxu0 %v1574
    %1618 = vmatprep.subr.bf16.mxu0 %v1578
    %1619 = vmatpush1.bf16.msra.mxu0 %v1577
    %1620 = vmatprep.subr.bf16.mxu0 0
    %1621 = vmatpush1.bf16.msra.mxu0 0
    %1622 = vmatprep.subr.bf16.mxu0 0
    %1623 = vmatpush1.bf16.msra.mxu0 0
    %1624 = vmatprep.subr.bf16.mxu0 0
    %1625 = vmatpush1.bf16.msra.mxu0 0
    %1626 = vmatprep.subr.bf16.mxu0 0
    %1627 = vmatpush1.bf16.msra.mxu0 0
    %1628 = vmatprep.subr.bf16.mxu0 0
    %1629 = vmatpush1.bf16.msra.mxu0 0
    %1630 = vmatprep.subr.bf16.mxu0 0
    %1631 = vmatpush1.bf16.msra.mxu0 0
    %1632 = vmatprep.subr.bf16.mxu0 0
    %1633 = vmatpush1.bf16.msra.mxu0 0
    %1634 = vmatprep.subr.bf16.mxu0 0
    %1635 = vmatpush1.bf16.msra.mxu0 0
    %1636 = vmatprep.mubr.bf16.mxu0 0
    %1637 = vmatmul.mubr.bf16.gmra.mrb[0].mxu0 %v1443
    %v1638 = vpop.f32.mrb[0].mxu0
    %v1639 = vadd.f32 0.0, %v1638
    %v1640 = vpop.f32.mrb[0].mxu0
    %v1641 = vadd.f32 0.0, %v1640
    %v1642 = vpop.f32.mrb[0].mxu0
    %v1643 = vpop.f32.mrb[0].mxu0
    %1644 = vdwg.mxu0
    %1645 = vmatprep.subr.bf16.mxu0 0
    %1646 = vmatpush1.bf16.msra.mxu0 %v1558
    %1647 = vmatprep.subr.bf16.mxu0 0
    %1648 = vmatpush1.bf16.msra.mxu0 %v1561
    %1649 = vmatprep.subr.bf16.mxu0 0
    %1650 = vmatpush1.bf16.msra.mxu0 %v1564
    %1651 = vmatprep.subr.bf16.mxu0 0
    %1652 = vmatpush1.bf16.msra.mxu0 %v1567
    %1653 = vmatprep.subr.bf16.mxu0 0
    %1654 = vmatpush1.bf16.msra.mxu0 %v1570
    %1655 = vmatprep.subr.bf16.mxu0 0
    %1656 = vmatpush1.bf16.msra.mxu0 %v1573
    %1657 = vmatprep.subr.bf16.mxu0 0
    %1658 = vmatpush1.bf16.msra.mxu0 %v1576
    %1659 = vmatprep.subr.bf16.mxu0 0
    %1660 = vmatpush1.bf16.msra.mxu0 %v1579
    %1661 = vmatprep.subr.bf16.mxu0 0
    %1662 = vmatpush1.bf16.msra.mxu0 0
    %1663 = vmatprep.subr.bf16.mxu0 0
    %1664 = vmatpush1.bf16.msra.mxu0 0
    %1665 = vmatprep.subr.bf16.mxu0 0
    %1666 = vmatpush1.bf16.msra.mxu0 0
    %1667 = vmatprep.subr.bf16.mxu0 0
    %1668 = vmatpush1.bf16.msra.mxu0 0
    %1669 = vmatprep.subr.bf16.mxu0 0
    %1670 = vmatpush1.bf16.msra.mxu0 0
    %1671 = vmatprep.subr.bf16.mxu0 0
    %1672 = vmatpush1.bf16.msra.mxu0 0
    %1673 = vmatprep.subr.bf16.mxu0 0
    %1674 = vmatpush1.bf16.msra.mxu0 0
    %1675 = vmatprep.subr.bf16.mxu0 0
    %1676 = vmatpush1.bf16.msra.mxu0 0
    %1677 = vmatprep.mubr.bf16.mxu0 0
    %1678 = vmatmul.mubr.bf16.gmra.mrb[0].mxu0 %v1443
    %v1679 = vpop.f32.mrb[0].mxu0
    %v1680 = vadd.f32 0.0, %v1679
    %v1681 = vpop.f32.mrb[0].mxu0
    %v1682 = vpop.f32.mrb[0].mxu0
    %v1683 = vpop.f32.mrb[0].mxu0
    %1684 = vdwg.mxu0
    %v1685 = vadd.f32 %v1442, %v1639
    %v1686 = vxor.u32 %v1685, 2147483648
    %v1687 = vmul.f32 %v1686, 1.442695
    %v1688 = vpow.pop %v1687
    %v1689 = vadd.f32 %v1688, 1.0
    %v1690 = vrcp.pop %v1689
    %v1691 = vmul.f32 1.0, %v1690
    %v1693 = vrot.slane %v1442, 1
    %v1695 = vadd.f32 %v1693, %v1641
    %v1696 = vxor.u32 %v1695, 2147483648
    %v1697 = vmul.f32 %v1696, 1.442695
    %v1698 = vpow.pop %v1697
    %v1699 = vadd.f32 %v1698, 1.0
    %v1700 = vrcp.pop %v1699
    %v1701 = vmul.f32 1.0, %v1700
    %v1702 = vld [vmem:[%s5] sm:$0x1]
    %v1703 = vadd.f32 %v1680, %v1702
    %v1704 = vmul.f32 %v1691, %v1703
    %v1705 = vrot.slane %v1442, 2
    %v1707 = vadd.f32 %v1705, %v1704
    %v1708 = vtanh.pop %v1707
    %v1709 = vsub.f32 1.0, %v1701
    %v1710 = vmul.f32 %v1709, %v1708
    %v1711 = vmul.f32 %v1701, %v1439
    %v1712 = vadd.f32 %v1710, %v1711
    %1713 = vst [vmem:[#allocation3 + $0x4] sm:$0x1] %v1712
    %s1714 = scalar_lea.vmem [#allocation2], 5
    %v1715 = vld [vmem:[%s1714] ss:$8 sm:$0x7]
    %v1716 = vpack.c.bf16 %v1712, %v1712
    %v1717 = vld [vmem:[#allocation9] sm:$0xff]
    %v1718 = vld [vmem:[#allocation9 + $0x8] sm:$0xf]
    %v1719 = vld [vmem:[#allocation9 + $0xc] sm:$0xff]
    %v1720 = vld [vmem:[#allocation9 + $0x14] sm:$0xf]
    %v1721 = vld [vmem:[#allocation9 + $0x18] sm:$0xff]
    %v1722 = vld [vmem:[#allocation9 + $0x20] sm:$0xf]
    %v1723 = vld [vmem:[#allocation9 + $0x24] sm:$0xff]
    %v1724 = vld [vmem:[#allocation9 + $0x2c] sm:$0xf]
    %v1725 = vld [vmem:[#allocation9 + $0x30] sm:$0xff]
    %v1726 = vld [vmem:[#allocation9 + $0x38] sm:$0xf]
    %v1727 = vld [vmem:[#allocation9 + $0x3c] sm:$0xff]
    %v1728 = vld [vmem:[#allocation9 + $0x44] sm:$0xf]
    %v1729 = vld [vmem:[#allocation9 + $0x48] sm:$0xff]
    %v1730 = vld [vmem:[#allocation9 + $0x50] sm:$0xf]
    %v1731 = vld [vmem:[#allocation9 + $0x54] sm:$0xff]
    %v1732 = vld [vmem:[#allocation9 + $0x5c] sm:$0xf]
    %v1733 = vld [vmem:[#allocation9 + $0x60] sm:$0xff]
    %v1734 = vld [vmem:[#allocation9 + $0x68] sm:$0xf]
    %v1735 = vld [vmem:[#allocation9 + $0x6c] sm:$0xff]
    %v1736 = vld [vmem:[#allocation9 + $0x74] sm:$0xf]
    %v1737 = vld [vmem:[#allocation9 + $0x78] sm:$0xff]
    %v1738 = vld [vmem:[#allocation9 + $0x80] sm:$0xf]
    %v1739 = vld [vmem:[#allocation9 + $0x84] sm:$0xff]
    %v1740 = vld [vmem:[#allocation9 + $0x8c] sm:$0xf]
    %v1741 = vld [vmem:[#allocation9 + $0x90] sm:$0xff]
    %v1742 = vld [vmem:[#allocation9 + $0x98] sm:$0xf]
    %v1743 = vld [vmem:[#allocation9 + $0x9c] sm:$0xff]
    %v1744 = vld [vmem:[#allocation9 + $0xa4] sm:$0xf]
    %v1745 = vld [vmem:[#allocation9 + $0xa8] sm:$0xff]
    %v1746 = vld [vmem:[#allocation9 + $0xb0] sm:$0xf]
    %v1747 = vld [vmem:[#allocation9 + $0xb4] sm:$0xff]
    %v1748 = vld [vmem:[#allocation9 + $0xbc] sm:$0xf]
    %v1781 = vunpack.c.l.b16 %v1717
    %v1782 = vunpack.c.h.b16 %v1717
    %v1783 = vunpack.c.l.b16 %v1718
    %v1784 = vunpack.c.l.b16 %v1719
    %v1785 = vunpack.c.h.b16 %v1719
    %v1786 = vunpack.c.l.b16 %v1720
    %v1787 = vunpack.c.l.b16 %v1721
    %v1788 = vunpack.c.h.b16 %v1721
    %v1789 = vunpack.c.l.b16 %v1722
    %v1790 = vunpack.c.l.b16 %v1723
    %v1791 = vunpack.c.h.b16 %v1723
    %v1792 = vunpack.c.l.b16 %v1724
    %v1793 = vunpack.c.l.b16 %v1725
    %v1794 = vunpack.c.h.b16 %v1725
    %v1795 = vunpack.c.l.b16 %v1726
    %v1796 = vunpack.c.l.b16 %v1727
    %v1797 = vunpack.c.h.b16 %v1727
    %v1798 = vunpack.c.l.b16 %v1728
    %v1799 = vunpack.c.l.b16 %v1729
    %v1800 = vunpack.c.h.b16 %v1729
    %v1801 = vunpack.c.l.b16 %v1730
    %v1802 = vunpack.c.l.b16 %v1731
    %v1803 = vunpack.c.h.b16 %v1731
    %v1804 = vunpack.c.l.b16 %v1732
    %v1805 = vunpack.c.l.b16 %v1733
    %v1806 = vunpack.c.h.b16 %v1733
    %v1807 = vunpack.c.l.b16 %v1734
    %v1808 = vunpack.c.l.b16 %v1735
    %v1809 = vunpack.c.h.b16 %v1735
    %v1810 = vunpack.c.l.b16 %v1736
    %v1811 = vunpack.c.l.b16 %v1737
    %v1812 = vunpack.c.h.b16 %v1737
    %v1813 = vunpack.c.l.b16 %v1738
    %v1814 = vunpack.c.l.b16 %v1739
    %v1815 = vunpack.c.h.b16 %v1739
    %v1816 = vunpack.c.l.b16 %v1740
    %v1817 = vunpack.c.l.b16 %v1741
    %v1818 = vunpack.c.h.b16 %v1741
    %v1819 = vunpack.c.l.b16 %v1742
    %v1820 = vunpack.c.l.b16 %v1743
    %v1821 = vunpack.c.h.b16 %v1743
    %v1822 = vunpack.c.l.b16 %v1744
    %v1823 = vunpack.c.l.b16 %v1745
    %v1824 = vunpack.c.h.b16 %v1745
    %v1825 = vunpack.c.l.b16 %v1746
    %v1826 = vunpack.c.l.b16 %v1747
    %v1827 = vunpack.c.h.b16 %v1747
    %v1828 = vunpack.c.l.b16 %v1748
    %v1829 = vpack.c.b16 %v1784, %v1781
    %v1830 = vpack.c.b16 %v1785, %v1782
    %v1831 = vpack.c.b16 %v1786, %v1783
    %v1832 = vpack.c.b16 %v1790, %v1787
    %v1833 = vpack.c.b16 %v1791, %v1788
    %v1834 = vpack.c.b16 %v1792, %v1789
    %v1835 = vpack.c.b16 %v1796, %v1793
    %v1836 = vpack.c.b16 %v1797, %v1794
    %v1837 = vpack.c.b16 %v1798, %v1795
    %v1838 = vpack.c.b16 %v1802, %v1799
    %v1839 = vpack.c.b16 %v1803, %v1800
    %v1840 = vpack.c.b16 %v1804, %v1801
    %v1841 = vpack.c.b16 %v1808, %v1805
    %v1842 = vpack.c.b16 %v1809, %v1806
    %v1843 = vpack.c.b16 %v1810, %v1807
    %v1844 = vpack.c.b16 %v1814, %v1811
    %v1845 = vpack.c.b16 %v1815, %v1812
    %v1846 = vpack.c.b16 %v1816, %v1813
    %v1847 = vpack.c.b16 %v1820, %v1817
    %v1848 = vpack.c.b16 %v1821, %v1818
    %v1849 = vpack.c.b16 %v1822, %v1819
    %v1850 = vpack.c.b16 %v1826, %v1823
    %v1851 = vpack.c.b16 %v1827, %v1824
    %v1852 = vpack.c.b16 %v1828, %v1825
    %1877 = vmatprep.subr.bf16.mxu0 %v1830
    %1878 = vmatpush1.bf16.msra.mxu0 %v1829
    %1879 = vmatprep.subr.bf16.mxu0 %v1833
    %1880 = vmatpush1.bf16.msra.mxu0 %v1832
    %1881 = vmatprep.subr.bf16.mxu0 %v1836
    %1882 = vmatpush1.bf16.msra.mxu0 %v1835
    %1883 = vmatprep.subr.bf16.mxu0 %v1839
    %1884 = vmatpush1.bf16.msra.mxu0 %v1838
    %1885 = vmatprep.subr.bf16.mxu0 %v1842
    %1886 = vmatpush1.bf16.msra.mxu0 %v1841
    %1887 = vmatprep.subr.bf16.mxu0 %v1845
    %1888 = vmatpush1.bf16.msra.mxu0 %v1844
    %1889 = vmatprep.subr.bf16.mxu0 %v1848
    %1890 = vmatpush1.bf16.msra.mxu0 %v1847
    %1891 = vmatprep.subr.bf16.mxu0 %v1851
    %1892 = vmatpush1.bf16.msra.mxu0 %v1850
    %1893 = vmatprep.subr.bf16.mxu0 0
    %1894 = vmatpush1.bf16.msra.mxu0 0
    %1895 = vmatprep.subr.bf16.mxu0 0
    %1896 = vmatpush1.bf16.msra.mxu0 0
    %1897 = vmatprep.subr.bf16.mxu0 0
    %1898 = vmatpush1.bf16.msra.mxu0 0
    %1899 = vmatprep.subr.bf16.mxu0 0
    %1900 = vmatpush1.bf16.msra.mxu0 0
    %1901 = vmatprep.subr.bf16.mxu0 0
    %1902 = vmatpush1.bf16.msra.mxu0 0
    %1903 = vmatprep.subr.bf16.mxu0 0
    %1904 = vmatpush1.bf16.msra.mxu0 0
    %1905 = vmatprep.subr.bf16.mxu0 0
    %1906 = vmatpush1.bf16.msra.mxu0 0
    %1907 = vmatprep.subr.bf16.mxu0 0
    %1908 = vmatpush1.bf16.msra.mxu0 0
    %1909 = vmatprep.mubr.bf16.mxu0 0
    %1910 = vmatmul.mubr.bf16.gmra.mrb[0].mxu0 %v1716
    %v1911 = vpop.f32.mrb[0].mxu0
    %v1912 = vadd.f32 0.0, %v1911
    %v1913 = vpop.f32.mrb[0].mxu0
    %v1914 = vadd.f32 0.0, %v1913
    %v1915 = vpop.f32.mrb[0].mxu0
    %v1916 = vpop.f32.mrb[0].mxu0
    %1917 = vdwg.mxu0
    %1918 = vmatprep.subr.bf16.mxu0 0
    %1919 = vmatpush1.bf16.msra.mxu0 %v1831
    %1920 = vmatprep.subr.bf16.mxu0 0
    %1921 = vmatpush1.bf16.msra.mxu0 %v1834
    %1922 = vmatprep.subr.bf16.mxu0 0
    %1923 = vmatpush1.bf16.msra.mxu0 %v1837
    %1924 = vmatprep.subr.bf16.mxu0 0
    %1925 = vmatpush1.bf16.msra.mxu0 %v1840
    %1926 = vmatprep.subr.bf16.mxu0 0
    %1927 = vmatpush1.bf16.msra.mxu0 %v1843
    %1928 = vmatprep.subr.bf16.mxu0 0
    %1929 = vmatpush1.bf16.msra.mxu0 %v1846
    %1930 = vmatprep.subr.bf16.mxu0 0
    %1931 = vmatpush1.bf16.msra.mxu0 %v1849
    %1932 = vmatprep.subr.bf16.mxu0 0
    %1933 = vmatpush1.bf16.msra.mxu0 %v1852
    %1934 = vmatprep.subr.bf16.mxu0 0
    %1935 = vmatpush1.bf16.msra.mxu0 0
    %1936 = vmatprep.subr.bf16.mxu0 0
    %1937 = vmatpush1.bf16.msra.mxu0 0
    %1938 = vmatprep.subr.bf16.mxu0 0
    %1939 = vmatpush1.bf16.msra.mxu0 0
    %1940 = vmatprep.subr.bf16.mxu0 0
    %1941 = vmatpush1.bf16.msra.mxu0 0
    %1942 = vmatprep.subr.bf16.mxu0 0
    %1943 = vmatpush1.bf16.msra.mxu0 0
    %1944 = vmatprep.subr.bf16.mxu0 0
    %1945 = vmatpush1.bf16.msra.mxu0 0
    %1946 = vmatprep.subr.bf16.mxu0 0
    %1947 = vmatpush1.bf16.msra.mxu0 0
    %1948 = vmatprep.subr.bf16.mxu0 0
    %1949 = vmatpush1.bf16.msra.mxu0 0
    %1950 = vmatprep.mubr.bf16.mxu0 0
    %1951 = vmatmul.mubr.bf16.gmra.mrb[0].mxu0 %v1716
    %v1952 = vpop.f32.mrb[0].mxu0
    %v1953 = vadd.f32 0.0, %v1952
    %v1954 = vpop.f32.mrb[0].mxu0
    %v1955 = vpop.f32.mrb[0].mxu0
    %v1956 = vpop.f32.mrb[0].mxu0
    %1957 = vdwg.mxu0
    %v1958 = vadd.f32 %v1715, %v1912
    %v1959 = vxor.u32 %v1958, 2147483648
    %v1960 = vmul.f32 %v1959, 1.442695
    %v1961 = vpow.pop %v1960
    %v1962 = vadd.f32 %v1961, 1.0
    %v1963 = vrcp.pop %v1962
    %v1964 = vmul.f32 1.0, %v1963
    %v1966 = vrot.slane %v1715, 1
    %v1968 = vadd.f32 %v1966, %v1914
    %v1969 = vxor.u32 %v1968, 2147483648
    %v1970 = vmul.f32 %v1969, 1.442695
    %v1971 = vpow.pop %v1970
    %v1972 = vadd.f32 %v1971, 1.0
    %v1973 = vrcp.pop %v1972
    %v1974 = vmul.f32 1.0, %v1973
    %v1975 = vld [vmem:[%s5] sm:$0x1]
    %v1976 = vadd.f32 %v1953, %v1975
    %v1977 = vmul.f32 %v1964, %v1976
    %v1978 = vrot.slane %v1715, 2
    %v1980 = vadd.f32 %v1978, %v1977
    %v1981 = vtanh.pop %v1980
    %v1982 = vsub.f32 1.0, %v1974
    %v1983 = vmul.f32 %v1982, %v1981
    %v1984 = vmul.f32 %v1974, %v1712
    %v1985 = vadd.f32 %v1983, %v1984
    %1986 = vst [vmem:[#allocation3 + $0x5] sm:$0x1] %v1985
    %s1987 = scalar_lea.vmem [#allocation2], 6
    %v1988 = vld [vmem:[%s1987] ss:$8 sm:$0x7]
    %v1989 = vpack.c.bf16 %v1985, %v1985
    %v1990 = vld [vmem:[#allocation9] sm:$0xff]
    %v1991 = vld [vmem:[#allocation9 + $0x8] sm:$0xf]
    %v1992 = vld [vmem:[#allocation9 + $0xc] sm:$0xff]
    %v1993 = vld [vmem:[#allocation9 + $0x14] sm:$0xf]
    %v1994 = vld [vmem:[#allocation9 + $0x18] sm:$0xff]
    %v1995 = vld [vmem:[#allocation9 + $0x20] sm:$0xf]
    %v1996 = vld [vmem:[#allocation9 + $0x24] sm:$0xff]
    %v1997 = vld [vmem:[#allocation9 + $0x2c] sm:$0xf]
    %v1998 = vld [vmem:[#allocation9 + $0x30] sm:$0xff]
    %v1999 = vld [vmem:[#allocation9 + $0x38] sm:$0xf]
    %v2000 = vld [vmem:[#allocation9 + $0x3c] sm:$0xff]
    %v2001 = vld [vmem:[#allocation9 + $0x44] sm:$0xf]
    %v2002 = vld [vmem:[#allocation9 + $0x48] sm:$0xff]
    %v2003 = vld [vmem:[#allocation9 + $0x50] sm:$0xf]
    %v2004 = vld [vmem:[#allocation9 + $0x54] sm:$0xff]
    %v2005 = vld [vmem:[#allocation9 + $0x5c] sm:$0xf]
    %v2006 = vld [vmem:[#allocation9 + $0x60] sm:$0xff]
    %v2007 = vld [vmem:[#allocation9 + $0x68] sm:$0xf]
    %v2008 = vld [vmem:[#allocation9 + $0x6c] sm:$0xff]
    %v2009 = vld [vmem:[#allocation9 + $0x74] sm:$0xf]
    %v2010 = vld [vmem:[#allocation9 + $0x78] sm:$0xff]
    %v2011 = vld [vmem:[#allocation9 + $0x80] sm:$0xf]
    %v2012 = vld [vmem:[#allocation9 + $0x84] sm:$0xff]
    %v2013 = vld [vmem:[#allocation9 + $0x8c] sm:$0xf]
    %v2014 = vld [vmem:[#allocation9 + $0x90] sm:$0xff]
    %v2015 = vld [vmem:[#allocation9 + $0x98] sm:$0xf]
    %v2016 = vld [vmem:[#allocation9 + $0x9c] sm:$0xff]
    %v2017 = vld [vmem:[#allocation9 + $0xa4] sm:$0xf]
    %v2018 = vld [vmem:[#allocation9 + $0xa8] sm:$0xff]
    %v2019 = vld [vmem:[#allocation9 + $0xb0] sm:$0xf]
    %v2020 = vld [vmem:[#allocation9 + $0xb4] sm:$0xff]
    %v2021 = vld [vmem:[#allocation9 + $0xbc] sm:$0xf]
    %v2054 = vunpack.c.l.b16 %v1990
    %v2055 = vunpack.c.h.b16 %v1990
    %v2056 = vunpack.c.l.b16 %v1991
    %v2057 = vunpack.c.l.b16 %v1992
    %v2058 = vunpack.c.h.b16 %v1992
    %v2059 = vunpack.c.l.b16 %v1993
    %v2060 = vunpack.c.l.b16 %v1994
    %v2061 = vunpack.c.h.b16 %v1994
    %v2062 = vunpack.c.l.b16 %v1995
    %v2063 = vunpack.c.l.b16 %v1996
    %v2064 = vunpack.c.h.b16 %v1996
    %v2065 = vunpack.c.l.b16 %v1997
    %v2066 = vunpack.c.l.b16 %v1998
    %v2067 = vunpack.c.h.b16 %v1998
    %v2068 = vunpack.c.l.b16 %v1999
    %v2069 = vunpack.c.l.b16 %v2000
    %v2070 = vunpack.c.h.b16 %v2000
    %v2071 = vunpack.c.l.b16 %v2001
    %v2072 = vunpack.c.l.b16 %v2002
    %v2073 = vunpack.c.h.b16 %v2002
    %v2074 = vunpack.c.l.b16 %v2003
    %v2075 = vunpack.c.l.b16 %v2004
    %v2076 = vunpack.c.h.b16 %v2004
    %v2077 = vunpack.c.l.b16 %v2005
    %v2078 = vunpack.c.l.b16 %v2006
    %v2079 = vunpack.c.h.b16 %v2006
    %v2080 = vunpack.c.l.b16 %v2007
    %v2081 = vunpack.c.l.b16 %v2008
    %v2082 = vunpack.c.h.b16 %v2008
    %v2083 = vunpack.c.l.b16 %v2009
    %v2084 = vunpack.c.l.b16 %v2010
    %v2085 = vunpack.c.h.b16 %v2010
    %v2086 = vunpack.c.l.b16 %v2011
    %v2087 = vunpack.c.l.b16 %v2012
    %v2088 = vunpack.c.h.b16 %v2012
    %v2089 = vunpack.c.l.b16 %v2013
    %v2090 = vunpack.c.l.b16 %v2014
    %v2091 = vunpack.c.h.b16 %v2014
    %v2092 = vunpack.c.l.b16 %v2015
    %v2093 = vunpack.c.l.b16 %v2016
    %v2094 = vunpack.c.h.b16 %v2016
    %v2095 = vunpack.c.l.b16 %v2017
    %v2096 = vunpack.c.l.b16 %v2018
    %v2097 = vunpack.c.h.b16 %v2018
    %v2098 = vunpack.c.l.b16 %v2019
    %v2099 = vunpack.c.l.b16 %v2020
    %v2100 = vunpack.c.h.b16 %v2020
    %v2101 = vunpack.c.l.b16 %v2021
    %v2102 = vpack.c.b16 %v2057, %v2054
    %v2103 = vpack.c.b16 %v2058, %v2055
    %v2104 = vpack.c.b16 %v2059, %v2056
    %v2105 = vpack.c.b16 %v2063, %v2060
    %v2106 = vpack.c.b16 %v2064, %v2061
    %v2107 = vpack.c.b16 %v2065, %v2062
    %v2108 = vpack.c.b16 %v2069, %v2066
    %v2109 = vpack.c.b16 %v2070, %v2067
    %v2110 = vpack.c.b16 %v2071, %v2068
    %v2111 = vpack.c.b16 %v2075, %v2072
    %v2112 = vpack.c.b16 %v2076, %v2073
    %v2113 = vpack.c.b16 %v2077, %v2074
    %v2114 = vpack.c.b16 %v2081, %v2078
    %v2115 = vpack.c.b16 %v2082, %v2079
    %v2116 = vpack.c.b16 %v2083, %v2080
    %v2117 = vpack.c.b16 %v2087, %v2084
    %v2118 = vpack.c.b16 %v2088, %v2085
    %v2119 = vpack.c.b16 %v2089, %v2086
    %v2120 = vpack.c.b16 %v2093, %v2090
    %v2121 = vpack.c.b16 %v2094, %v2091
    %v2122 = vpack.c.b16 %v2095, %v2092
    %v2123 = vpack.c.b16 %v2099, %v2096
    %v2124 = vpack.c.b16 %v2100, %v2097
    %v2125 = vpack.c.b16 %v2101, %v2098
    %2150 = vmatprep.subr.bf16.mxu0 %v2103
    %2151 = vmatpush1.bf16.msra.mxu0 %v2102
    %2152 = vmatprep.subr.bf16.mxu0 %v2106
    %2153 = vmatpush1.bf16.msra.mxu0 %v2105
    %2154 = vmatprep.subr.bf16.mxu0 %v2109
    %2155 = vmatpush1.bf16.msra.mxu0 %v2108
    %2156 = vmatprep.subr.bf16.mxu0 %v2112
    %2157 = vmatpush1.bf16.msra.mxu0 %v2111
    %2158 = vmatprep.subr.bf16.mxu0 %v2115
    %2159 = vmatpush1.bf16.msra.mxu0 %v2114
    %2160 = vmatprep.subr.bf16.mxu0 %v2118
    %2161 = vmatpush1.bf16.msra.mxu0 %v2117
    %2162 = vmatprep.subr.bf16.mxu0 %v2121
    %2163 = vmatpush1.bf16.msra.mxu0 %v2120
    %2164 = vmatprep.subr.bf16.mxu0 %v2124
    %2165 = vmatpush1.bf16.msra.mxu0 %v2123
    %2166 = vmatprep.subr.bf16.mxu0 0
    %2167 = vmatpush1.bf16.msra.mxu0 0
    %2168 = vmatprep.subr.bf16.mxu0 0
    %2169 = vmatpush1.bf16.msra.mxu0 0
    %2170 = vmatprep.subr.bf16.mxu0 0
    %2171 = vmatpush1.bf16.msra.mxu0 0
    %2172 = vmatprep.subr.bf16.mxu0 0
    %2173 = vmatpush1.bf16.msra.mxu0 0
    %2174 = vmatprep.subr.bf16.mxu0 0
    %2175 = vmatpush1.bf16.msra.mxu0 0
    %2176 = vmatprep.subr.bf16.mxu0 0
    %2177 = vmatpush1.bf16.msra.mxu0 0
    %2178 = vmatprep.subr.bf16.mxu0 0
    %2179 = vmatpush1.bf16.msra.mxu0 0
    %2180 = vmatprep.subr.bf16.mxu0 0
    %2181 = vmatpush1.bf16.msra.mxu0 0
    %2182 = vmatprep.mubr.bf16.mxu0 0
    %2183 = vmatmul.mubr.bf16.gmra.mrb[0].mxu0 %v1989
    %v2184 = vpop.f32.mrb[0].mxu0
    %v2185 = vadd.f32 0.0, %v2184
    %v2186 = vpop.f32.mrb[0].mxu0
    %v2187 = vadd.f32 0.0, %v2186
    %v2188 = vpop.f32.mrb[0].mxu0
    %v2189 = vpop.f32.mrb[0].mxu0
    %2190 = vdwg.mxu0
    %2191 = vmatprep.subr.bf16.mxu0 0
    %2192 = vmatpush1.bf16.msra.mxu0 %v2104
    %2193 = vmatprep.subr.bf16.mxu0 0
    %2194 = vmatpush1.bf16.msra.mxu0 %v2107
    %2195 = vmatprep.subr.bf16.mxu0 0
    %2196 = vmatpush1.bf16.msra.mxu0 %v2110
    %2197 = vmatprep.subr.bf16.mxu0 0
    %2198 = vmatpush1.bf16.msra.mxu0 %v2113
    %2199 = vmatprep.subr.bf16.mxu0 0
    %2200 = vmatpush1.bf16.msra.mxu0 %v2116
    %2201 = vmatprep.subr.bf16.mxu0 0
    %2202 = vmatpush1.bf16.msra.mxu0 %v2119
    %2203 = vmatprep.subr.bf16.mxu0 0
    %2204 = vmatpush1.bf16.msra.mxu0 %v2122
    %2205 = vmatprep.subr.bf16.mxu0 0
    %2206 = vmatpush1.bf16.msra.mxu0 %v2125
    %2207 = vmatprep.subr.bf16.mxu0 0
    %2208 = vmatpush1.bf16.msra.mxu0 0
    %2209 = vmatprep.subr.bf16.mxu0 0
    %2210 = vmatpush1.bf16.msra.mxu0 0
    %2211 = vmatprep.subr.bf16.mxu0 0
    %2212 = vmatpush1.bf16.msra.mxu0 0
    %2213 = vmatprep.subr.bf16.mxu0 0
    %2214 = vmatpush1.bf16.msra.mxu0 0
    %2215 = vmatprep.subr.bf16.mxu0 0
    %2216 = vmatpush1.bf16.msra.mxu0 0
    %2217 = vmatprep.subr.bf16.mxu0 0
    %2218 = vmatpush1.bf16.msra.mxu0 0
    %2219 = vmatprep.subr.bf16.mxu0 0
    %2220 = vmatpush1.bf16.msra.mxu0 0
    %2221 = vmatprep.subr.bf16.mxu0 0
    %2222 = vmatpush1.bf16.msra.mxu0 0
    %2223 = vmatprep.mubr.bf16.mxu0 0
    %2224 = vmatmul.mubr.bf16.gmra.mrb[0].mxu0 %v1989
    %v2225 = vpop.f32.mrb[0].mxu0
    %v2226 = vadd.f32 0.0, %v2225
    %v2227 = vpop.f32.mrb[0].mxu0
    %v2228 = vpop.f32.mrb[0].mxu0
    %v2229 = vpop.f32.mrb[0].mxu0
    %2230 = vdwg.mxu0
    %v2231 = vadd.f32 %v1988, %v2185
    %v2232 = vxor.u32 %v2231, 2147483648
    %v2233 = vmul.f32 %v2232, 1.442695
    %v2234 = vpow.pop %v2233
    %v2235 = vadd.f32 %v2234, 1.0
    %v2236 = vrcp.pop %v2235
    %v2237 = vmul.f32 1.0, %v2236
    %v2239 = vrot.slane %v1988, 1
    %v2241 = vadd.f32 %v2239, %v2187
    %v2242 = vxor.u32 %v2241, 2147483648
    %v2243 = vmul.f32 %v2242, 1.442695
    %v2244 = vpow.pop %v2243
    %v2245 = vadd.f32 %v2244, 1.0
    %v2246 = vrcp.pop %v2245
    %v2247 = vmul.f32 1.0, %v2246
    %v2248 = vld [vmem:[%s5] sm:$0x1]
    %v2249 = vadd.f32 %v2226, %v2248
    %v2250 = vmul.f32 %v2237, %v2249
    %v2251 = vrot.slane %v1988, 2
    %v2253 = vadd.f32 %v2251, %v2250
    %v2254 = vtanh.pop %v2253
    %v2255 = vsub.f32 1.0, %v2247
    %v2256 = vmul.f32 %v2255, %v2254
    %v2257 = vmul.f32 %v2247, %v1985
    %v2258 = vadd.f32 %v2256, %v2257
    %2259 = vst [vmem:[#allocation3 + $0x6] sm:$0x1] %v2258
    %s2260 = scalar_lea.vmem [#allocation2], 7
    %v2261 = vld [vmem:[%s2260] ss:$8 sm:$0x7]
    %v2262 = vpack.c.bf16 %v2258, %v2258
    %v2263 = vld [vmem:[#allocation9] sm:$0xff]
    %v2264 = vld [vmem:[#allocation9 + $0x8] sm:$0xf]
    %v2265 = vld [vmem:[#allocation9 + $0xc] sm:$0xff]
    %v2266 = vld [vmem:[#allocation9 + $0x14] sm:$0xf]
    %v2267 = vld [vmem:[#allocation9 + $0x18] sm:$0xff]
    %v2268 = vld [vmem:[#allocation9 + $0x20] sm:$0xf]
    %v2269 = vld [vmem:[#allocation9 + $0x24] sm:$0xff]
    %v2270 = vld [vmem:[#allocation9 + $0x2c] sm:$0xf]
    %v2271 = vld [vmem:[#allocation9 + $0x30] sm:$0xff]
    %v2272 = vld [vmem:[#allocation9 + $0x38] sm:$0xf]
    %v2273 = vld [vmem:[#allocation9 + $0x3c] sm:$0xff]
    %v2274 = vld [vmem:[#allocation9 + $0x44] sm:$0xf]
    %v2275 = vld [vmem:[#allocation9 + $0x48] sm:$0xff]
    %v2276 = vld [vmem:[#allocation9 + $0x50] sm:$0xf]
    %v2277 = vld [vmem:[#allocation9 + $0x54] sm:$0xff]
    %v2278 = vld [vmem:[#allocation9 + $0x5c] sm:$0xf]
    %v2279 = vld [vmem:[#allocation9 + $0x60] sm:$0xff]
    %v2280 = vld [vmem:[#allocation9 + $0x68] sm:$0xf]
    %v2281 = vld [vmem:[#allocation9 + $0x6c] sm:$0xff]
    %v2282 = vld [vmem:[#allocation9 + $0x74] sm:$0xf]
    %v2283 = vld [vmem:[#allocation9 + $0x78] sm:$0xff]
    %v2284 = vld [vmem:[#allocation9 + $0x80] sm:$0xf]
    %v2285 = vld [vmem:[#allocation9 + $0x84] sm:$0xff]
    %v2286 = vld [vmem:[#allocation9 + $0x8c] sm:$0xf]
    %v2287 = vld [vmem:[#allocation9 + $0x90] sm:$0xff]
    %v2288 = vld [vmem:[#allocation9 + $0x98] sm:$0xf]
    %v2289 = vld [vmem:[#allocation9 + $0x9c] sm:$0xff]
    %v2290 = vld [vmem:[#allocation9 + $0xa4] sm:$0xf]
    %v2291 = vld [vmem:[#allocation9 + $0xa8] sm:$0xff]
    %v2292 = vld [vmem:[#allocation9 + $0xb0] sm:$0xf]
    %v2293 = vld [vmem:[#allocation9 + $0xb4] sm:$0xff]
    %v2294 = vld [vmem:[#allocation9 + $0xbc] sm:$0xf]
    %v2327 = vunpack.c.l.b16 %v2263
    %v2328 = vunpack.c.h.b16 %v2263
    %v2329 = vunpack.c.l.b16 %v2264
    %v2330 = vunpack.c.l.b16 %v2265
    %v2331 = vunpack.c.h.b16 %v2265
    %v2332 = vunpack.c.l.b16 %v2266
    %v2333 = vunpack.c.l.b16 %v2267
    %v2334 = vunpack.c.h.b16 %v2267
    %v2335 = vunpack.c.l.b16 %v2268
    %v2336 = vunpack.c.l.b16 %v2269
    %v2337 = vunpack.c.h.b16 %v2269
    %v2338 = vunpack.c.l.b16 %v2270
    %v2339 = vunpack.c.l.b16 %v2271
    %v2340 = vunpack.c.h.b16 %v2271
    %v2341 = vunpack.c.l.b16 %v2272
    %v2342 = vunpack.c.l.b16 %v2273
    %v2343 = vunpack.c.h.b16 %v2273
    %v2344 = vunpack.c.l.b16 %v2274
    %v2345 = vunpack.c.l.b16 %v2275
    %v2346 = vunpack.c.h.b16 %v2275
    %v2347 = vunpack.c.l.b16 %v2276
    %v2348 = vunpack.c.l.b16 %v2277
    %v2349 = vunpack.c.h.b16 %v2277
    %v2350 = vunpack.c.l.b16 %v2278
    %v2351 = vunpack.c.l.b16 %v2279
    %v2352 = vunpack.c.h.b16 %v2279
    %v2353 = vunpack.c.l.b16 %v2280
    %v2354 = vunpack.c.l.b16 %v2281
    %v2355 = vunpack.c.h.b16 %v2281
    %v2356 = vunpack.c.l.b16 %v2282
    %v2357 = vunpack.c.l.b16 %v2283
    %v2358 = vunpack.c.h.b16 %v2283
    %v2359 = vunpack.c.l.b16 %v2284
    %v2360 = vunpack.c.l.b16 %v2285
    %v2361 = vunpack.c.h.b16 %v2285
    %v2362 = vunpack.c.l.b16 %v2286
    %v2363 = vunpack.c.l.b16 %v2287
    %v2364 = vunpack.c.h.b16 %v2287
    %v2365 = vunpack.c.l.b16 %v2288
    %v2366 = vunpack.c.l.b16 %v2289
    %v2367 = vunpack.c.h.b16 %v2289
    %v2368 = vunpack.c.l.b16 %v2290
    %v2369 = vunpack.c.l.b16 %v2291
    %v2370 = vunpack.c.h.b16 %v2291
    %v2371 = vunpack.c.l.b16 %v2292
    %v2372 = vunpack.c.l.b16 %v2293
    %v2373 = vunpack.c.h.b16 %v2293
    %v2374 = vunpack.c.l.b16 %v2294
    %v2375 = vpack.c.b16 %v2330, %v2327
    %v2376 = vpack.c.b16 %v2331, %v2328
    %v2377 = vpack.c.b16 %v2332, %v2329
    %v2378 = vpack.c.b16 %v2336, %v2333
    %v2379 = vpack.c.b16 %v2337, %v2334
    %v2380 = vpack.c.b16 %v2338, %v2335
    %v2381 = vpack.c.b16 %v2342, %v2339
    %v2382 = vpack.c.b16 %v2343, %v2340
    %v2383 = vpack.c.b16 %v2344, %v2341
    %v2384 = vpack.c.b16 %v2348, %v2345
    %v2385 = vpack.c.b16 %v2349, %v2346
    %v2386 = vpack.c.b16 %v2350, %v2347
    %v2387 = vpack.c.b16 %v2354, %v2351
    %v2388 = vpack.c.b16 %v2355, %v2352
    %v2389 = vpack.c.b16 %v2356, %v2353
    %v2390 = vpack.c.b16 %v2360, %v2357
    %v2391 = vpack.c.b16 %v2361, %v2358
    %v2392 = vpack.c.b16 %v2362, %v2359
    %v2393 = vpack.c.b16 %v2366, %v2363
    %v2394 = vpack.c.b16 %v2367, %v2364
    %v2395 = vpack.c.b16 %v2368, %v2365
    %v2396 = vpack.c.b16 %v2372, %v2369
    %v2397 = vpack.c.b16 %v2373, %v2370
    %v2398 = vpack.c.b16 %v2374, %v2371
    %2423 = vmatprep.subr.bf16.mxu0 %v2376
    %2424 = vmatpush1.bf16.msra.mxu0 %v2375
    %2425 = vmatprep.subr.bf16.mxu0 %v2379
    %2426 = vmatpush1.bf16.msra.mxu0 %v2378
    %2427 = vmatprep.subr.bf16.mxu0 %v2382
    %2428 = vmatpush1.bf16.msra.mxu0 %v2381
    %2429 = vmatprep.subr.bf16.mxu0 %v2385
    %2430 = vmatpush1.bf16.msra.mxu0 %v2384
    %2431 = vmatprep.subr.bf16.mxu0 %v2388
    %2432 = vmatpush1.bf16.msra.mxu0 %v2387
    %2433 = vmatprep.subr.bf16.mxu0 %v2391
    %2434 = vmatpush1.bf16.msra.mxu0 %v2390
    %2435 = vmatprep.subr.bf16.mxu0 %v2394
    %2436 = vmatpush1.bf16.msra.mxu0 %v2393
    %2437 = vmatprep.subr.bf16.mxu0 %v2397
    %2438 = vmatpush1.bf16.msra.mxu0 %v2396
    %2439 = vmatprep.subr.bf16.mxu0 0
    %2440 = vmatpush1.bf16.msra.mxu0 0
    %2441 = vmatprep.subr.bf16.mxu0 0
    %2442 = vmatpush1.bf16.msra.mxu0 0
    %2443 = vmatprep.subr.bf16.mxu0 0
    %2444 = vmatpush1.bf16.msra.mxu0 0
    %2445 = vmatprep.subr.bf16.mxu0 0
    %2446 = vmatpush1.bf16.msra.mxu0 0
    %2447 = vmatprep.subr.bf16.mxu0 0
    %2448 = vmatpush1.bf16.msra.mxu0 0
    %2449 = vmatprep.subr.bf16.mxu0 0
    %2450 = vmatpush1.bf16.msra.mxu0 0
    %2451 = vmatprep.subr.bf16.mxu0 0
    %2452 = vmatpush1.bf16.msra.mxu0 0
    %2453 = vmatprep.subr.bf16.mxu0 0
    %2454 = vmatpush1.bf16.msra.mxu0 0
    %2455 = vmatprep.mubr.bf16.mxu0 0
    %2456 = vmatmul.mubr.bf16.gmra.mrb[0].mxu0 %v2262
    %v2457 = vpop.f32.mrb[0].mxu0
    %v2458 = vadd.f32 0.0, %v2457
    %v2459 = vpop.f32.mrb[0].mxu0
    %v2460 = vadd.f32 0.0, %v2459
    %v2461 = vpop.f32.mrb[0].mxu0
    %v2462 = vpop.f32.mrb[0].mxu0
    %2463 = vdwg.mxu0
    %2464 = vmatprep.subr.bf16.mxu0 0
    %2465 = vmatpush1.bf16.msra.mxu0 %v2377
    %2466 = vmatprep.subr.bf16.mxu0 0
    %2467 = vmatpush1.bf16.msra.mxu0 %v2380
    %2468 = vmatprep.subr.bf16.mxu0 0
    %2469 = vmatpush1.bf16.msra.mxu0 %v2383
    %2470 = vmatprep.subr.bf16.mxu0 0
    %2471 = vmatpush1.bf16.msra.mxu0 %v2386
    %2472 = vmatprep.subr.bf16.mxu0 0
    %2473 = vmatpush1.bf16.msra.mxu0 %v2389
    %2474 = vmatprep.subr.bf16.mxu0 0
    %2475 = vmatpush1.bf16.msra.mxu0 %v2392
    %2476 = vmatprep.subr.bf16.mxu0 0
    %2477 = vmatpush1.bf16.msra.mxu0 %v2395
    %2478 = vmatprep.subr.bf16.mxu0 0
    %2479 = vmatpush1.bf16.msra.mxu0 %v2398
    %2480 = vmatprep.subr.bf16.mxu0 0
    %2481 = vmatpush1.bf16.msra.mxu0 0
    %2482 = vmatprep.subr.bf16.mxu0 0
    %2483 = vmatpush1.bf16.msra.mxu0 0
    %2484 = vmatprep.subr.bf16.mxu0 0
    %2485 = vmatpush1.bf16.msra.mxu0 0
    %2486 = vmatprep.subr.bf16.mxu0 0
    %2487 = vmatpush1.bf16.msra.mxu0 0
    %2488 = vmatprep.subr.bf16.mxu0 0
    %2489 = vmatpush1.bf16.msra.mxu0 0
    %2490 = vmatprep.subr.bf16.mxu0 0
    %2491 = vmatpush1.bf16.msra.mxu0 0
    %2492 = vmatprep.subr.bf16.mxu0 0
    %2493 = vmatpush1.bf16.msra.mxu0 0
    %2494 = vmatprep.subr.bf16.mxu0 0
    %2495 = vmatpush1.bf16.msra.mxu0 0
    %2496 = vmatprep.mubr.bf16.mxu0 0
    %2497 = vmatmul.mubr.bf16.gmra.mrb[0].mxu0 %v2262
    %v2498 = vpop.f32.mrb[0].mxu0
    %v2499 = vadd.f32 0.0, %v2498
    %v2500 = vpop.f32.mrb[0].mxu0
    %v2501 = vpop.f32.mrb[0].mxu0
    %v2502 = vpop.f32.mrb[0].mxu0
    %2503 = vdwg.mxu0
    %v2504 = vadd.f32 %v2261, %v2458
    %v2505 = vxor.u32 %v2504, 2147483648
    %v2506 = vmul.f32 %v2505, 1.442695
    %v2507 = vpow.pop %v2506
    %v2508 = vadd.f32 %v2507, 1.0
    %v2509 = vrcp.pop %v2508
    %v2510 = vmul.f32 1.0, %v2509
    %v2512 = vrot.slane %v2261, 1
    %v2514 = vadd.f32 %v2512, %v2460
    %v2515 = vxor.u32 %v2514, 2147483648
    %v2516 = vmul.f32 %v2515, 1.442695
    %v2517 = vpow.pop %v2516
    %v2518 = vadd.f32 %v2517, 1.0
    %v2519 = vrcp.pop %v2518
    %v2520 = vmul.f32 1.0, %v2519
    %v2521 = vld [vmem:[%s5] sm:$0x1]
    %v2522 = vadd.f32 %v2499, %v2521
    %v2523 = vmul.f32 %v2510, %v2522
    %v2524 = vrot.slane %v2261, 2
    %v2526 = vadd.f32 %v2524, %v2523
    %v2527 = vtanh.pop %v2526
    %v2528 = vsub.f32 1.0, %v2520
    %v2529 = vmul.f32 %v2528, %v2527
    %v2530 = vmul.f32 %v2520, %v2258
    %v2531 = vadd.f32 %v2529, %v2530
    %2532 = vst [vmem:[#allocation3 + $0x7] sm:$0x1] %v2531
    %v2533 = vld [vmem:[#allocation3] sm:$0xff]
    %v2534 = vpack.c.bf16 %v2533, %v2533
    %v2535 = vld [vmem:[#allocation10] sm:$0xf]
    %v2536 = vld [vmem:[#allocation10 + $0x4] sm:$0xf]
    %v2537 = vld [vmem:[#allocation10 + $0x8] sm:$0xf]
    %v2538 = vld [vmem:[#allocation10 + $0xc] sm:$0xf]
    %v2539 = vld [vmem:[#allocation10 + $0x10] sm:$0xf]
    %v2540 = vld [vmem:[#allocation10 + $0x14] sm:$0xf]
    %v2541 = vld [vmem:[#allocation10 + $0x18] sm:$0xf]
    %v2542 = vld [vmem:[#allocation10 + $0x1c] sm:$0xf]
    %v2543 = vld [vmem:[#allocation10 + $0x20] sm:$0xf]
    %v2544 = vld [vmem:[#allocation10 + $0x24] sm:$0xf]
    %v2545 = vld [vmem:[#allocation10 + $0x28] sm:$0xf]
    %v2546 = vld [vmem:[#allocation10 + $0x2c] sm:$0xf]
    %v2547 = vld [vmem:[#allocation10 + $0x30] sm:$0xf]
    %v2548 = vld [vmem:[#allocation10 + $0x34] sm:$0xf]
    %v2549 = vld [vmem:[#allocation10 + $0x38] sm:$0xf]
    %v2550 = vld [vmem:[#allocation10 + $0x3c] sm:$0xf]
    %v2551 = vld [vmem:[%s7] sm:$0x1]
    %v2553 = vlaneseq
    %v2554 = vshrl.u32 %v2553, 7
    %v2555 = vsub.s32 0, %v2554
    %v2556 = vrot.slane %v2551, %v2555
    %v2574 = vunpack.c.l.b16 %v2535
    %v2575 = vunpack.c.l.b16 %v2536
    %v2576 = vunpack.c.l.b16 %v2537
    %v2577 = vunpack.c.l.b16 %v2538
    %v2578 = vunpack.c.l.b16 %v2539
    %v2579 = vunpack.c.l.b16 %v2540
    %v2580 = vunpack.c.l.b16 %v2541
    %v2581 = vunpack.c.l.b16 %v2542
    %v2582 = vunpack.c.l.b16 %v2543
    %v2583 = vunpack.c.l.b16 %v2544
    %v2584 = vunpack.c.l.b16 %v2545
    %v2585 = vunpack.c.l.b16 %v2546
    %v2586 = vunpack.c.l.b16 %v2547
    %v2587 = vunpack.c.l.b16 %v2548
    %v2588 = vunpack.c.l.b16 %v2549
    %v2589 = vunpack.c.l.b16 %v2550
    %v2590 = vpack.c.b16 %v2575, %v2574
    %v2591 = vpack.c.b16 %v2577, %v2576
    %v2592 = vpack.c.b16 %v2579, %v2578
    %v2593 = vpack.c.b16 %v2581, %v2580
    %v2594 = vpack.c.b16 %v2583, %v2582
    %v2595 = vpack.c.b16 %v2585, %v2584
    %v2596 = vpack.c.b16 %v2587, %v2586
    %v2597 = vpack.c.b16 %v2589, %v2588
    %2606 = vmatprep.subr.bf16.mxu0 0
    %2607 = vmatpush1.bf16.msra.mxu0 %v2590
    %2608 = vmatprep.subr.bf16.mxu0 0
    %2609 = vmatpush1.bf16.msra.mxu0 %v2591
    %2610 = vmatprep.subr.bf16.mxu0 0
    %2611 = vmatpush1.bf16.msra.mxu0 %v2592
    %2612 = vmatprep.subr.bf16.mxu0 0
    %2613 = vmatpush1.bf16.msra.mxu0 %v2593
    %2614 = vmatprep.subr.bf16.mxu0 0
    %2615 = vmatpush1.bf16.msra.mxu0 %v2594
    %2616 = vmatprep.subr.bf16.mxu0 0
    %2617 = vmatpush1.bf16.msra.mxu0 %v2595
    %2618 = vmatprep.subr.bf16.mxu0 0
    %2619 = vmatpush1.bf16.msra.mxu0 %v2596
    %2620 = vmatprep.subr.bf16.mxu0 0
    %2621 = vmatpush1.bf16.msra.mxu0 %v2597
    %2622 = vmatprep.subr.bf16.mxu0 0
    %2623 = vmatpush1.bf16.msra.mxu0 0
    %2624 = vmatprep.subr.bf16.mxu0 0
    %2625 = vmatpush1.bf16.msra.mxu0 0
    %2626 = vmatprep.subr.bf16.mxu0 0
    %2627 = vmatpush1.bf16.msra.mxu0 0
    %2628 = vmatprep.subr.bf16.mxu0 0
    %2629 = vmatpush1.bf16.msra.mxu0 0
    %2630 = vmatprep.subr.bf16.mxu0 0
    %2631 = vmatpush1.bf16.msra.mxu0 0
    %2632 = vmatprep.subr.bf16.mxu0 0
    %2633 = vmatpush1.bf16.msra.mxu0 0
    %2634 = vmatprep.subr.bf16.mxu0 0
    %2635 = vmatpush1.bf16.msra.mxu0 0
    %2636 = vmatprep.subr.bf16.mxu0 0
    %2637 = vmatpush1.bf16.msra.mxu0 0
    %2638 = vmatprep.mubr.bf16.mxu0 0
    %2639 = vmatmul.mubr.bf16.gmra.mrb[0].mxu0 %v2534
    %v2640 = vpop.f32.mrb[0].mxu0
    %v2641 = vadd.f32 %v2556, %v2640
    %v2642 = vpop.f32.mrb[0].mxu0
    %v2643 = vpop.f32.mrb[0].mxu0
    %v2644 = vpop.f32.mrb[0].mxu0
    %2645 = vdwg.mxu0
    %2646 = vst [vmem:[#allocation12] sm:$0xff] %v2641
    %2647 = vst [vmem:[#allocation13] sm:$0x1] %v2531
    // Predicated region
    $region50: #{tpu_custom_call.1} parent=1 // pred_check
      _
    $region51: #{tpu_custom_call.1} parent=1 // pred_check_branch
      %2649 = sbr.rel (0) target = $region53
    $region52: #{tpu_custom_call.1} parent=1 // pred_region
      %s2651 = ssub.s32 128, 128
      %2652 = vsyncadd [#allocation6], %s2651
      %s2654 = sshll.u32 [#allocation12], 4
      %s2655 = int_to_ptr.vmem [resolvable:$true] %s2654
      %2657 = dma.vmem_to_hbm [thread:$0]  %s2655, 128, %s8, [#allocation6]
    $region53: #{tpu_custom_call.1} parent=1 // pred_fallthru
      _
    // Predicated region
    $region54: #{tpu_custom_call.1} parent=1 // pred_check
      _
    $region55: #{tpu_custom_call.1} parent=1 // pred_check_branch
      %2659 = sbr.rel (0) target = $region57
    $region56: #{tpu_custom_call.1} parent=1 // pred_region
      %s2661 = ssub.s32 16, 16
      %2662 = vsyncadd [#allocation14], %s2661
      %s2664 = sshll.u32 [#allocation13], 4
      %s2665 = int_to_ptr.vmem [resolvable:$true] %s2664
      %2667 = dma.vmem_to_hbm [thread:$0]  %s2665, 16, %s9, [#allocation14]
    $region57: #{tpu_custom_call.1} parent=1 // pred_fallthru
      _
    // Predicated region
    $region58: #{tpu_custom_call.1} parent=1 // pred_check
      _
    $region59: #{tpu_custom_call.1} parent=1 // pred_check_branch
      %2669 = sbr.rel (0) target = $region61
    $region60: #{tpu_custom_call.1} parent=1 // pred_region
      %2670 = dma.done [#allocation6], 128
    $region61: #{tpu_custom_call.1} parent=1 // pred_fallthru
      _
    // Predicated region
    $region62: #{tpu_custom_call.1} parent=1 // pred_check
      _
    $region63: #{tpu_custom_call.1} parent=1 // pred_check_branch
      %2672 = sbr.rel (0) target = $region65
    $region64: #{tpu_custom_call.1} parent=1 // pred_region
      %2673 = dma.done [#allocation14], 16
    $region65: #{tpu_custom_call.1} parent=1 // pred_fallthru
      _
    %2674 = vsyncpa [#allocation5], 1
    %2675 = vsyncpa [#allocation8], 1
    %2676 = vsyncpa [#allocation11], 1
    %2677 = vsyncpa [#allocation6], 1
    %2678 = vsyncpa [#allocation14], 1

</llo_original>
